<compile_context>
chip_gen: v5e
topology: v5e:2x2
jax: 0.10.0
libtpu: 0.0.40
codegen_flags: <defaults>
</compile_context>

<pallas_src>
import jax
import jax.numpy as jnp
from jax.experimental import pallas as pl
from jax.experimental.pallas import tpu as pltpu


LANE = 128   # TPU lane width; channel axes are padded to this
OFF = 8      # sublane-aligned left offset of the conv2 interior in the scratch


def _round_up(x, m):
    return (x + m - 1) // m * m


def _pad_axis(a, axis, target):
    amt = target - a.shape[axis]
    if amt == 0:
        return a
    cfg = [(0, 0)] * a.ndim
    cfg[axis] = (0, amt)
    return jnp.pad(a, cfg)


def bottleneck_kernel(x_ref, xh_ref, w1_ref, w2_ref, w3_ref,
                      b1_ref, b2_ref, b3_ref, o_ref, pad_ref):
    # x_ref : (TH, W, Cin_p)        bf16   main rows of this H tile
    # xh_ref: (2, W, Cin_p)         bf16   halo rows (above / below the tile)
    # w1_ref: (Cin_p, Cw_p)         bf16   conv1 weight, bn1 scale folded in
    # w2_ref: (9*Cw_p, Cw_p)        bf16   conv2 weight, dx-major rows, bn2 folded
    # w3_ref: (Cw_p, Cout_p)        bf16   conv3 weight, bn3 scale folded in
    # b*_ref: (1, C)                f32    bn biases
    # o_ref : (TH, W, Cout_p)       bf16
    # pad_ref: (TH+2, Wscr, Cw_p)   bf16   zero-bordered scratch for the 3x3 conv
    TH, W, Cin = x_ref.shape
    Cw = w1_ref.shape[1]
    Cout = w3_ref.shape[1]
    Wscr = pad_ref.shape[1]

    t = pl.program_id(1)
    nt = pl.num_programs(1)

    w1 = w1_ref[...]
    b1 = b1_ref[...]          # (1, Cw)  f32
    b2 = b2_ref[...]          # (1, Cw)  f32
    b3 = b3_ref[...]          # (1, Cout) f32

    # ---- conv1 (1x1, scale-folded) + bias + relu, explicit 2D matmul ----
    x = x_ref[...]                                     # (TH, W, Cin) bf16
    x2 = x.reshape(TH * W, Cin)
    h1 = jnp.dot(x2, w1, preferred_element_type=jnp.float32) + b1
    h1 = jnp.maximum(h1, 0.0)
    # bf16 directly into the aligned scratch interior (unmasked aligned store)
    pad_ref[1:TH + 1, OFF:OFF + W, :] = (
        h1.astype(pad_ref.dtype).reshape(TH, W, Cw))

    # ---- conv1 on the two halo rows; zero them at the image borders ----
    xh2 = xh_ref[...].reshape(2 * W, Cin)
    h1h = jnp.dot(xh2, w1, preferred_element_type=jnp.float32) + b1
    h1h = jnp.maximum(h1h, 0.0).reshape(2, W, Cw)
    top = jnp.where(t > 0, h1h[0], 0.0).astype(pad_ref.dtype)
    bot = jnp.where(t < nt - 1, h1h[1], 0.0).astype(pad_ref.dtype)
    pad_ref[0, OFF:OFF + W, :] = top
    pad_ref[TH + 1, OFF:OFF + W, :] = bot

    # ---- zero only the border column slabs conv2 reads as padding ----
    pad_ref[:, 0:OFF, :] = jnp.zeros((TH + 2, OFF, Cw), pad_ref.dtype)
    pad_ref[:, OFF + W:, :] = jnp.zeros((TH + 2, Wscr - OFF - W, Cw),
                                        pad_ref.dtype)

    # ---- conv2 (3x3) as one im2col matmul ----
    # Only 3 sublane-shifted slab loads (one per dx); the dy sub-slices are
    # free outer-axis views.  Channel blocks are ordered dx-major to match
    # the wrapper's w2 row ordering.
    pieces = []
    for dx in range(3):
        c0 = OFF - 1 + dx
        slab = pad_ref[:, c0:c0 + W, :]                # (TH+2, W, Cw) bf16
        for dy in range(3):
            pieces.append(slab[dy:dy + TH])            # (TH, W, Cw)
    im2col = jnp.concatenate(pieces, axis=-1).reshape(TH * W, 9 * Cw)
    h2 = jnp.dot(im2col, w2_ref[...], preferred_element_type=jnp.float32) + b2
    h2 = jnp.maximum(h2, 0.0)

    # ---- conv3 (1x1, scale-folded) + bias + residual + relu ----
    h3 = jnp.dot(h2.astype(jnp.bfloat16), w3_ref[...],
                 preferred_element_type=jnp.float32) + b3
    h3 = h3 + x2.astype(jnp.float32)                   # identity (Cin == Cout)
    o_ref[...] = jnp.maximum(h3, 0.0).astype(o_ref.dtype).reshape(TH, W, Cout)


def fold_bn(gamma, beta, mean, var, eps=1e-5):
    scale = gamma / jnp.sqrt(var + eps)
    bias = beta - mean * scale
    return scale, bias                                 # flat (C,) vectors


@jax.jit
def bottleneck_forward(x_nhwc, params):
    """x_nhwc: (N, H, W, Cin) f32.  params: conv weights + folded BN (s, b)."""
    (w1, s1, b1, w2, s2, b2, w3, s3, b3) = params
    N, H, W, Cin = x_nhwc.shape
    Cw = w1.shape[1]
    Cout = w3.shape[1]
    assert Cout == Cin, "downsample=None requires inplanes == planes*expansion"

    # NOTE: pad to LANE=128; at real ResNet channel counts keep native
    # multiples of 256 intact so the 256-wide MXU on v6e/v7x stays fully fed.
    Cin_p = _round_up(Cin, LANE)
    Cw_p = _round_up(Cw, LANE)
    Cout_p = _round_up(Cout, LANE)

    # H row-tile size (1-row halo each side); whole image if H not tileable.
    TH = 8 if H % 8 == 0 else H
    nt = H // TH

    # --- fold BN scales into weights, pad channels, store bf16 ---
    w1f = w1 * s1[None, :]                              # (Cin, Cw)
    w2f = w2 * s2[None, None, None, :]                  # (3, 3, Cw, Cw) HWIO
    w3f = w3 * s3[None, :]                              # (Cw, Cout)

    w1p = _pad_axis(_pad_axis(w1f, 0, Cin_p), 1, Cw_p).astype(jnp.bfloat16)
    w2p = _pad_axis(_pad_axis(w2f, 2, Cw_p), 3, Cw_p)
    # dx-major row ordering (dx, dy, cin) to match the in-kernel im2col order.
    w2p = w2p.transpose(1, 0, 2, 3).reshape(9 * Cw_p, Cw_p).astype(jnp.bfloat16)
    w3p = _pad_axis(_pad_axis(w3f, 0, Cw_p), 1, Cout_p).astype(jnp.bfloat16)

    b1p = _pad_axis(b1, 0, Cw_p).reshape(1, Cw_p).astype(jnp.float32)
    b2p = _pad_axis(b2, 0, Cw_p).reshape(1, Cw_p).astype(jnp.float32)
    b3p = _pad_axis(b3, 0, Cout_p).reshape(1, Cout_p).astype(jnp.float32)

    x_p = _pad_axis(x_nhwc, 3, Cin_p).astype(jnp.bfloat16)

    # Halo rows per tile: row above (zeros at image top) and row below
    # (zeros at image bottom).  Tiny side input -> standard non-overlapping
    # BlockSpecs everywhere.
    zrow = jnp.zeros((N, 1, W, Cin_p), jnp.bfloat16)
    xz = jnp.concatenate([zrow, x_p, zrow], axis=1)     # (N, H+2, W, Cin_p)
    tidx = jnp.arange(nt) * TH
    xh = jnp.stack([xz[:, tidx], xz[:, tidx + TH + 1]], axis=2)  # (N,nt,2,W,C)

    Wscr = _round_up(OFF + W + 1, 8)                    # aligned scratch width

    def full(a):
        nd = a.ndim
        return pl.BlockSpec(a.shape, lambda b, t, _nd=nd: (0,) * _nd)

    out = pl.pallas_call(
        bottleneck_kernel,
        out_shape=jax.ShapeDtypeStruct((N, H, W, Cout_p), jnp.bfloat16),
        grid=(N, nt),
        in_specs=[
            pl.BlockSpec((None, TH, W, Cin_p), lambda b, t: (b, t, 0, 0)),
            pl.BlockSpec((None, None, 2, W, Cin_p),
                         lambda b, t: (b, t, 0, 0, 0)),
            full(w1p), full(w2p), full(w3p),
            full(b1p), full(b2p), full(b3p),
        ],
        out_specs=pl.BlockSpec((None, TH, W, Cout_p), lambda b, t: (b, t, 0, 0)),
        scratch_shapes=[pltpu.VMEM((TH + 2, Wscr, Cw_p), jnp.bfloat16)],
        compiler_params=pltpu.CompilerParams(
            dimension_semantics=("parallel", "parallel"),
            vmem_limit_bytes=32 * 1024 * 1024),
    )(x_p, xh, w1p, w2p, w3p, b1p, b2p, b3p)

    return out[..., :Cout]


def reference_forward(x_nhwc, params):
    """Plain-JAX f32 reference (NHWC) matching the PyTorch module semantics."""
    (w1, s1, b1, w2, s2, b2, w3, s3, b3) = params
    dn = ("NHWC", "HWIO", "NHWC")
    h = jax.lax.conv_general_dilated(x_nhwc, w1[None, None], (1, 1), "SAME",
                                     dimension_numbers=dn)
    h = jnp.maximum(h * s1 + b1, 0.0)
    h = jax.lax.conv_general_dilated(h, w2, (1, 1), "SAME",
                                     dimension_numbers=dn)
    h = jnp.maximum(h * s2 + b2, 0.0)
    h = jax.lax.conv_general_dilated(h, w3[None, None], (1, 1), "SAME",
                                     dimension_numbers=dn)
    h = h * s3 + b3
    return jnp.maximum(h + x_nhwc, 0.0)


if __name__ == "__main__":
    # Module config (defaults): stride=1, groups=1, base_width=64, dilation=1,
    # downsample=None, activation=ReLU, norm_layer=BatchNorm2d.
    N, H, W = 2, 16, 16
    planes = 4
    expansion = 4
    inplanes = planes * expansion           # 16, so identity add is valid
    width = int(planes * (64 / 64.0)) * 1   # 4

    key = jax.random.PRNGKey(0)
    keys = jax.random.split(key, 8)

    x = jax.random.normal(keys[0], (N, H, W, inplanes), jnp.float32)

    # conv weights (1x1 stored as (Cin, Cout); 3x3 stored HWIO)
    w1 = jax.random.normal(keys[1], (inplanes, width), jnp.float32) * 0.1
    w2 = jax.random.normal(keys[2], (3, 3, width, width), jnp.float32) * 0.1
    w3 = jax.random.normal(keys[3], (width, planes * expansion), jnp.float32) * 0.1

    def bn_params(k, c):
        k1, k2, k3, k4 = jax.random.split(k, 4)
        gamma = 1.0 + 0.1 * jax.random.normal(k1, (c,), jnp.float32)
        beta = 0.1 * jax.random.normal(k2, (c,), jnp.float32)
        mean = 0.1 * jax.random.normal(k3, (c,), jnp.float32)
        var = 1.0 + 0.1 * jax.random.uniform(k4, (c,), jnp.float32)
        return fold_bn(gamma, beta, mean, var)

    s1, b1 = bn_params(keys[4], width)
    s2, b2 = bn_params(keys[5], width)
    s3, b3 = bn_params(keys[6], planes * expansion)

    params = (w1, s1, b1, w2, s2, b2, w3, s3, b3)

    out = bottleneck_forward(x, params)
    out = jax.block_until_ready(out).astype(jnp.float32)

    ref = reference_forward(x, params)
    assert out.shape == (N, H, W, planes * expansion)
    # bf16 storage / matmuls (incl. bf16-rounded residual) vs f32 reference.
    assert jnp.allclose(out, ref, rtol=2e-2, atol=2e-2), "mismatch vs reference"

    print("KERNEL_OK")
</pallas_src>

<mosaic_0001>
module attributes {stable_mosaic.version = 11 : i64} {
  func.func @bottleneck_kernel(%arg0: i32, %arg1: i32, %arg2: memref<1x8x16x128xbf16, #tpu.memory_space<vmem>>, %arg3: memref<1x1x2x16x128xbf16, #tpu.memory_space<vmem>>, %arg4: memref<128x128xbf16, #tpu.memory_space<vmem>>, %arg5: memref<1152x128xbf16, #tpu.memory_space<vmem>>, %arg6: memref<128x128xbf16, #tpu.memory_space<vmem>>, %arg7: memref<1x128xf32, #tpu.memory_space<vmem>>, %arg8: memref<1x128xf32, #tpu.memory_space<vmem>>, %arg9: memref<1x128xf32, #tpu.memory_space<vmem>>, %arg10: memref<1x8x16x128xbf16, #tpu.memory_space<vmem>>, %arg11: memref<10x32x128xbf16, #tpu.memory_space<vmem>>) attributes {dimension_semantics = [#tpu.dimension_semantics<parallel>, #tpu.dimension_semantics<parallel>], iteration_bounds = array<i64: 2, 2>, scalar_prefetch = 0 : i64, scratch_operands = 1 : i64, tpu.core_type = #tpu.core_type<tc>, window_params = [{transform_indices = @transform_0, window_bounds = array<i64: 1, 8, 16, 128>}, {transform_indices = @transform_1, window_bounds = array<i64: 1, 1, 2, 16, 128>}, {pipeline_mode = #tpu.pipeline_mode<synchronous>, transform_indices = @transform_2, window_bounds = array<i64: 128, 128>}, {pipeline_mode = #tpu.pipeline_mode<synchronous>, transform_indices = @transform_3, window_bounds = array<i64: 1152, 128>}, {pipeline_mode = #tpu.pipeline_mode<synchronous>, transform_indices = @transform_4, window_bounds = array<i64: 128, 128>}, {pipeline_mode = #tpu.pipeline_mode<synchronous>, transform_indices = @transform_5, window_bounds = array<i64: 1, 128>}, {pipeline_mode = #tpu.pipeline_mode<synchronous>, transform_indices = @transform_6, window_bounds = array<i64: 1, 128>}, {pipeline_mode = #tpu.pipeline_mode<synchronous>, transform_indices = @transform_7, window_bounds = array<i64: 1, 128>}, {transform_indices = @transform_8, window_bounds = array<i64: 1, 8, 16, 128>}]} {
    %c0 = arith.constant 0 : index
    %c0_0 = arith.constant 0 : index
    %0 = vector.load %arg4[%c0, %c0_0] : memref<128x128xbf16, #tpu.memory_space<vmem>>, vector<128x128xbf16>
    %c0_1 = arith.constant 0 : index
    %c0_2 = arith.constant 0 : index
    %1 = vector.load %arg7[%c0_1, %c0_2] : memref<1x128xf32, #tpu.memory_space<vmem>>, vector<1x128xf32>
    %c0_3 = arith.constant 0 : index
    %c0_4 = arith.constant 0 : index
    %2 = vector.load %arg8[%c0_3, %c0_4] : memref<1x128xf32, #tpu.memory_space<vmem>>, vector<1x128xf32>
    %c0_5 = arith.constant 0 : index
    %c0_6 = arith.constant 0 : index
    %3 = vector.load %arg9[%c0_5, %c0_6] : memref<1x128xf32, #tpu.memory_space<vmem>>, vector<1x128xf32>
    %c0_7 = arith.constant 0 : index
    %c0_8 = arith.constant 0 : index
    %c0_9 = arith.constant 0 : index
    %c0_10 = arith.constant 0 : index
    %4 = vector.load %arg2[%c0_7, %c0_8, %c0_9, %c0_10] : memref<1x8x16x128xbf16, #tpu.memory_space<vmem>>, vector<1x8x16x128xbf16>
    %5 = vector.shape_cast %4 : vector<1x8x16x128xbf16> to vector<8x16x128xbf16>
    %6 = vector.shape_cast %5 : vector<8x16x128xbf16> to vector<128x128xbf16>
    %cst = arith.constant dense<0.000000e+00> : vector<128x128xf32>
    %7 = tpu.matmul %6, %0, %cst {dimension_numbers = #tpu.dot_dimension_numbers<[1], [0], [0], [1], [0, 0, 1, 1], [], []>} : vector<128x128xbf16>, vector<128x128xbf16>, vector<128x128xf32> -> vector<128x128xf32>
    %8 = vector.broadcast %1 : vector<1x128xf32> to vector<128x128xf32>
    %9 = arith.addf %7, %8 : vector<128x128xf32>
    %cst_11 = arith.constant 0.000000e+00 : f32
    %10 = vector.broadcast %cst_11 : f32 to vector<128x128xf32>
    %11 = arith.maximumf %9, %10 : vector<128x128xf32>
    %12 = arith.truncf %11 : vector<128x128xf32> to vector<128x128xbf16>
    %13 = vector.shape_cast %12 : vector<128x128xbf16> to vector<8x16x128xbf16>
    %c1 = arith.constant 1 : index
    %c8 = arith.constant 8 : index
    %c0_12 = arith.constant 0 : index
    %14 = vector.load %arg11[%c1, %c8, %c0_12] : memref<10x32x128xbf16, #tpu.memory_space<vmem>>, vector<8x16x128xbf16>
    tpu.vector_store %arg11[%c1, %c8, %c0_12], %13 {strides = array<i32>} : memref<10x32x128xbf16, #tpu.memory_space<vmem>>, vector<8x16x128xbf16>,
    %c0_13 = arith.constant 0 : index
    %c0_14 = arith.constant 0 : index
    %c0_15 = arith.constant 0 : index
    %c0_16 = arith.constant 0 : index
    %c0_17 = arith.constant 0 : index
    %15 = vector.load %arg3[%c0_13, %c0_14, %c0_15, %c0_16, %c0_17] : memref<1x1x2x16x128xbf16, #tpu.memory_space<vmem>>, vector<1x1x2x16x128xbf16>
    %16 = vector.shape_cast %15 : vector<1x1x2x16x128xbf16> to vector<2x16x128xbf16>
    %17 = vector.shape_cast %16 : vector<2x16x128xbf16> to vector<32x128xbf16>
    %cst_18 = arith.constant dense<0.000000e+00> : vector<32x128xf32>
    %18 = tpu.matmul %17, %0, %cst_18 {dimension_numbers = #tpu.dot_dimension_numbers<[1], [0], [0], [1], [0, 0, 1, 1], [], []>} : vector<32x128xbf16>, vector<128x128xbf16>, vector<32x128xf32> -> vector<32x128xf32>
    %19 = vector.broadcast %1 : vector<1x128xf32> to vector<32x128xf32>
    %20 = arith.addf %18, %19 : vector<32x128xf32>
    %cst_19 = arith.constant 0.000000e+00 : f32
    %21 = vector.broadcast %cst_19 : f32 to vector<32x128xf32>
    %22 = arith.maximumf %20, %21 : vector<32x128xf32>
    %23 = vector.shape_cast %22 : vector<32x128xf32> to vector<2x16x128xf32>
    %c0_i32 = arith.constant 0 : i32
    %24 = arith.cmpi sgt, %arg1, %c0_i32 : i32
    %25 = vector.extract_strided_slice %23 {offsets = [0, 0, 0], sizes = [1, 16, 128], strides = [1, 1, 1]} : vector<2x16x128xf32> to vector<1x16x128xf32>
    %26 = vector.shape_cast %25 : vector<1x16x128xf32> to vector<16x128xf32>
    %cst_20 = arith.constant 0.000000e+00 : f32
    %27 = vector.broadcast %cst_20 : f32 to vector<16x128xf32>
    %28 = arith.select %24, %26, %27 : vector<16x128xf32>
    %29 = arith.truncf %28 : vector<16x128xf32> to vector<16x128xbf16>
    %c1_i32 = arith.constant 1 : i32
    %30 = arith.cmpi slt, %arg1, %c1_i32 : i32
    %31 = vector.extract_strided_slice %23 {offsets = [1, 0, 0], sizes = [1, 16, 128], strides = [1, 1, 1]} : vector<2x16x128xf32> to vector<1x16x128xf32>
    %32 = vector.shape_cast %31 : vector<1x16x128xf32> to vector<16x128xf32>
    %cst_21 = arith.constant 0.000000e+00 : f32
    %33 = vector.broadcast %cst_21 : f32 to vector<16x128xf32>
    %34 = arith.select %30, %32, %33 : vector<16x128xf32>
    %35 = arith.truncf %34 : vector<16x128xf32> to vector<16x128xbf16>
    %c0_22 = arith.constant 0 : index
    %c8_23 = arith.constant 8 : index
    %c0_24 = arith.constant 0 : index
    %36 = vector.load %arg11[%c0_22, %c8_23, %c0_24] : memref<10x32x128xbf16, #tpu.memory_space<vmem>>, vector<1x16x128xbf16>
    %37 = vector.shape_cast %36 : vector<1x16x128xbf16> to vector<16x128xbf16>
    %38 = vector.shape_cast %29 : vector<16x128xbf16> to vector<1x16x128xbf16>
    tpu.vector_store %arg11[%c0_22, %c8_23, %c0_24], %38 {strides = array<i32>} : memref<10x32x128xbf16, #tpu.memory_space<vmem>>, vector<1x16x128xbf16>,
    %c9 = arith.constant 9 : index
    %c8_25 = arith.constant 8 : index
    %c0_26 = arith.constant 0 : index
    %39 = vector.load %arg11[%c9, %c8_25, %c0_26] : memref<10x32x128xbf16, #tpu.memory_space<vmem>>, vector<1x16x128xbf16>
    %40 = vector.shape_cast %39 : vector<1x16x128xbf16> to vector<16x128xbf16>
    %41 = vector.shape_cast %35 : vector<16x128xbf16> to vector<1x16x128xbf16>
    tpu.vector_store %arg11[%c9, %c8_25, %c0_26], %41 {strides = array<i32>} : memref<10x32x128xbf16, #tpu.memory_space<vmem>>, vector<1x16x128xbf16>,
    %cst_27 = arith.constant 0.000000e+00 : bf16
    %42 = vector.broadcast %cst_27 : bf16 to vector<10x8x128xbf16>
    %c0_28 = arith.constant 0 : index
    %c0_29 = arith.constant 0 : index
    %c0_30 = arith.constant 0 : index
    %43 = vector.load %arg11[%c0_28, %c0_29, %c0_30] : memref<10x32x128xbf16, #tpu.memory_space<vmem>>, vector<10x8x128xbf16>
    tpu.vector_store %arg11[%c0_28, %c0_29, %c0_30], %42 {strides = array<i32>} : memref<10x32x128xbf16, #tpu.memory_space<vmem>>, vector<10x8x128xbf16>,
    %cst_31 = arith.constant 0.000000e+00 : bf16
    %44 = vector.broadcast %cst_31 : bf16 to vector<10x8x128xbf16>
    %c0_32 = arith.constant 0 : index
    %c24 = arith.constant 24 : index
    %c0_33 = arith.constant 0 : index
    %45 = vector.load %arg11[%c0_32, %c24, %c0_33] : memref<10x32x128xbf16, #tpu.memory_space<vmem>>, vector<10x8x128xbf16>
    tpu.vector_store %arg11[%c0_32, %c24, %c0_33], %44 {strides = array<i32>} : memref<10x32x128xbf16, #tpu.memory_space<vmem>>, vector<10x8x128xbf16>,
    %c0_34 = arith.constant 0 : index
    %c7 = arith.constant 7 : index
    %c0_35 = arith.constant 0 : index
    %46 = vector.load %arg11[%c0_34, %c7, %c0_35] : memref<10x32x128xbf16, #tpu.memory_space<vmem>>, vector<10x16x128xbf16>
    %47 = vector.extract_strided_slice %46 {offsets = [0, 0, 0], sizes = [8, 16, 128], strides = [1, 1, 1]} : vector<10x16x128xbf16> to vector<8x16x128xbf16>
    %48 = vector.extract_strided_slice %46 {offsets = [1, 0, 0], sizes = [8, 16, 128], strides = [1, 1, 1]} : vector<10x16x128xbf16> to vector<8x16x128xbf16>
    %49 = vector.extract_strided_slice %46 {offsets = [2, 0, 0], sizes = [8, 16, 128], strides = [1, 1, 1]} : vector<10x16x128xbf16> to vector<8x16x128xbf16>
    %c0_36 = arith.constant 0 : index
    %c8_37 = arith.constant 8 : index
    %c0_38 = arith.constant 0 : index
    %50 = vector.load %arg11[%c0_36, %c8_37, %c0_38] : memref<10x32x128xbf16, #tpu.memory_space<vmem>>, vector<10x16x128xbf16>
    %51 = vector.extract_strided_slice %50 {offsets = [0, 0, 0], sizes = [8, 16, 128], strides = [1, 1, 1]} : vector<10x16x128xbf16> to vector<8x16x128xbf16>
    %52 = vector.extract_strided_slice %50 {offsets = [1, 0, 0], sizes = [8, 16, 128], strides = [1, 1, 1]} : vector<10x16x128xbf16> to vector<8x16x128xbf16>
    %53 = vector.extract_strided_slice %50 {offsets = [2, 0, 0], sizes = [8, 16, 128], strides = [1, 1, 1]} : vector<10x16x128xbf16> to vector<8x16x128xbf16>
    %c0_39 = arith.constant 0 : index
    %c9_40 = arith.constant 9 : index
    %c0_41 = arith.constant 0 : index
    %54 = vector.load %arg11[%c0_39, %c9_40, %c0_41] : memref<10x32x128xbf16, #tpu.memory_space<vmem>>, vector<10x16x128xbf16>
    %55 = vector.extract_strided_slice %54 {offsets = [0, 0, 0], sizes = [8, 16, 128], strides = [1, 1, 1]} : vector<10x16x128xbf16> to vector<8x16x128xbf16>
    %56 = vector.extract_strided_slice %54 {offsets = [1, 0, 0], sizes = [8, 16, 128], strides = [1, 1, 1]} : vector<10x16x128xbf16> to vector<8x16x128xbf16>
    %57 = vector.extract_strided_slice %54 {offsets = [2, 0, 0], sizes = [8, 16, 128], strides = [1, 1, 1]} : vector<10x16x128xbf16> to vector<8x16x128xbf16>
    %58 = tpu.concatenate %47, %48, %49, %51, %52, %53, %55, %56, %57 in 2 : vector<8x16x128xbf16>, vector<8x16x128xbf16>, vector<8x16x128xbf16>, vector<8x16x128xbf16>, vector<8x16x128xbf16>, vector<8x16x128xbf16>, vector<8x16x128xbf16>, vector<8x16x128xbf16>, vector<8x16x128xbf16> -> vector<8x16x1152xbf16>
    %59 = vector.shape_cast %58 : vector<8x16x1152xbf16> to vector<128x1152xbf16>
    %c0_42 = arith.constant 0 : index
    %c0_43 = arith.constant 0 : index
    %60 = vector.load %arg5[%c0_42, %c0_43] : memref<1152x128xbf16, #tpu.memory_space<vmem>>, vector<1152x128xbf16>
    %cst_44 = arith.constant dense<0.000000e+00> : vector<128x128xf32>
    %61 = tpu.matmul %59, %60, %cst_44 {dimension_numbers = #tpu.dot_dimension_numbers<[1], [0], [0], [1], [0, 0, 1, 1], [], []>} : vector<128x1152xbf16>, vector<1152x128xbf16>, vector<128x128xf32> -> vector<128x128xf32>
    %62 = vector.broadcast %2 : vector<1x128xf32> to vector<128x128xf32>
    %63 = arith.addf %61, %62 : vector<128x128xf32>
    %cst_45 = arith.constant 0.000000e+00 : f32
    %64 = vector.broadcast %cst_45 : f32 to vector<128x128xf32>
    %65 = arith.maximumf %63, %64 : vector<128x128xf32>
    %66 = arith.truncf %65 : vector<128x128xf32> to vector<128x128xbf16>
    %c0_46 = arith.constant 0 : index
    %c0_47 = arith.constant 0 : index
    %67 = vector.load %arg6[%c0_46, %c0_47] : memref<128x128xbf16, #tpu.memory_space<vmem>>, vector<128x128xbf16>
    %cst_48 = arith.constant dense<0.000000e+00> : vector<128x128xf32>
    %68 = tpu.matmul %66, %67, %cst_48 {dimension_numbers = #tpu.dot_dimension_numbers<[1], [0], [0], [1], [0, 0, 1, 1], [], []>} : vector<128x128xbf16>, vector<128x128xbf16>, vector<128x128xf32> -> vector<128x128xf32>
    %69 = vector.broadcast %3 : vector<1x128xf32> to vector<128x128xf32>
    %70 = arith.addf %68, %69 : vector<128x128xf32>
    %71 = arith.extf %6 : vector<128x128xbf16> to vector<128x128xf32>
    %72 = arith.addf %70, %71 : vector<128x128xf32>
    %cst_49 = arith.constant 0.000000e+00 : f32
    %73 = vector.broadcast %cst_49 : f32 to vector<128x128xf32>
    %74 = arith.maximumf %72, %73 : vector<128x128xf32>
    %75 = arith.truncf %74 : vector<128x128xf32> to vector<128x128xbf16>
    %76 = vector.shape_cast %75 : vector<128x128xbf16> to vector<8x16x128xbf16>
    %c0_50 = arith.constant 0 : index
    %c0_51 = arith.constant 0 : index
    %c0_52 = arith.constant 0 : index
    %c0_53 = arith.constant 0 : index
    %77 = vector.load %arg10[%c0_50, %c0_51, %c0_52, %c0_53] : memref<1x8x16x128xbf16, #tpu.memory_space<vmem>>, vector<1x8x16x128xbf16>
    %78 = vector.shape_cast %77 : vector<1x8x16x128xbf16> to vector<8x16x128xbf16>
    %79 = vector.shape_cast %76 : vector<8x16x128xbf16> to vector<1x8x16x128xbf16>
    tpu.vector_store %arg10[%c0_50, %c0_51, %c0_52, %c0_53], %79 {strides = array<i32>} : memref<1x8x16x128xbf16, #tpu.memory_space<vmem>>, vector<1x8x16x128xbf16>,
    return
  }
  func.func @transform_0(%arg0: i32, %arg1: i32) -> (i32, i32, i32, i32) {
    %c0_i32 = arith.constant 0 : i32
    %c0_i32_0 = arith.constant 0 : i32
    %c0_i32_1 = arith.constant 0 : i32
    return %arg0, %arg1, %c0_i32, %c0_i32_0 : i32, i32, i32, i32
  }
  func.func @transform_1(%arg0: i32, %arg1: i32) -> (i32, i32, i32, i32, i32) {
    %c0_i32 = arith.constant 0 : i32
    %c0_i32_0 = arith.constant 0 : i32
    %c0_i32_1 = arith.constant 0 : i32
    %c0_i32_2 = arith.constant 0 : i32
    return %arg0, %arg1, %c0_i32, %c0_i32_0, %c0_i32_1 : i32, i32, i32, i32, i32
  }
  func.func @transform_2(%arg0: i32, %arg1: i32) -> (i32, i32) {
    %c0_i32 = arith.constant 0 : i32
    %c0_i32_0 = arith.constant 0 : i32
    %c0_i32_1 = arith.constant 0 : i32
    return %c0_i32, %c0_i32_0 : i32, i32
  }
  func.func @transform_3(%arg0: i32, %arg1: i32) -> (i32, i32) {
    %c0_i32 = arith.constant 0 : i32
    %c0_i32_0 = arith.constant 0 : i32
    %c0_i32_1 = arith.constant 0 : i32
    return %c0_i32, %c0_i32_0 : i32, i32
  }
  func.func @transform_4(%arg0: i32, %arg1: i32) -> (i32, i32) {
    %c0_i32 = arith.constant 0 : i32
    %c0_i32_0 = arith.constant 0 : i32
    %c0_i32_1 = arith.constant 0 : i32
    return %c0_i32, %c0_i32_0 : i32, i32
  }
  func.func @transform_5(%arg0: i32, %arg1: i32) -> (i32, i32) {
    %c0_i32 = arith.constant 0 : i32
    %c0_i32_0 = arith.constant 0 : i32
    %c0_i32_1 = arith.constant 0 : i32
    return %c0_i32, %c0_i32_0 : i32, i32
  }
  func.func @transform_6(%arg0: i32, %arg1: i32) -> (i32, i32) {
    %c0_i32 = arith.constant 0 : i32
    %c0_i32_0 = arith.constant 0 : i32
    %c0_i32_1 = arith.constant 0 : i32
    return %c0_i32, %c0_i32_0 : i32, i32
  }
  func.func @transform_7(%arg0: i32, %arg1: i32) -> (i32, i32) {
    %c0_i32 = arith.constant 0 : i32
    %c0_i32_0 = arith.constant 0 : i32
    %c0_i32_1 = arith.constant 0 : i32
    return %c0_i32, %c0_i32_0 : i32, i32
  }
  func.func @transform_8(%arg0: i32, %arg1: i32) -> (i32, i32, i32, i32) {
    %c0_i32 = arith.constant 0 : i32
    %c0_i32_0 = arith.constant 0 : i32
    %c0_i32_1 = arith.constant 0 : i32
    return %arg0, %arg1, %c0_i32, %c0_i32_0 : i32, i32, i32, i32
  }
}

</mosaic_0001>

<llo_original>
// kernel: bottleneck_forward.1
$region0: #{bottleneck_forward.1}
  #allocation0 [shape = 'u32[]', space=smem, size = 0x4, offset = 0x4, fixed_abs, tag = 'smem constant byte address 0x4 - core index']
  #allocation1 [shape = 'u32[72,128]{1,0:T(1,128)}', space=vmem, size = 0x9000, scoped, tag = 'internal scratch']
  #allocation2 [shape = 'bf16[10,32,128]{2,1,0:T(8,128)(2,1)}', space=vmem, size = 0x14000, scoped, tag = 'scratch operand']
  %s0 = inlined_call_operand.vmem [shape: bf16[2,16,16,128], index: 0, kind: input, shape index: {}]
  %s1 = inlined_call_operand.vmem [shape: bf16[2,2,2,16,128], index: 1, kind: input, shape index: {}]
  %s2 = inlined_call_operand.vmem [shape: bf16[128,128], index: 2, kind: input, shape index: {}]
  %s3 = inlined_call_operand.vmem [shape: bf16[1152,128], index: 3, kind: input, shape index: {}]
  %s4 = inlined_call_operand.vmem [shape: bf16[128,128], index: 4, kind: input, shape index: {}]
  %s5 = inlined_call_operand.vmem [shape: f32[1,128], index: 5, kind: input, shape index: {}]
  %s6 = inlined_call_operand.vmem [shape: f32[1,128], index: 6, kind: input, shape index: {}]
  %s7 = inlined_call_operand.vmem [shape: f32[1,128], index: 7, kind: input, shape index: {}]
  %s8 = inlined_call_operand.hbm [shape: bf16[2,16,16,128], index: 8, kind: output, shape index: {}]
  %s9 = sld [smem:[#allocation0]]
  $region65: #{bottleneck_forward.1} parent=0
    _
  %s11 = ssub.s32 1, %s9
  %s12 = scalar_select 0, %s11, %s9
  $region1: #{bottleneck_forward.1} parent=0
    #allocation3 [shape = 'u8[65536]{0}', space=vmem, size = 0x10000, scoped, tag = 'output window, operand 0']
    #allocation4 [shape = 's32[2]{0}', space=sflag, size = 0x8, scoped, tag = 'scoped memory for bottleneck_forward.1']
    %13 = vsyncpa [#allocation4], 0
    %s14 = scalar_lea.sflag [#allocation4], 1
    %15 = vsyncpa %s14, 0
    loop: start=0, step=1, limit=6
    $region2: #{bottleneck_forward.1} parent=1 // loop_pre_header
      _
    $region3: #{bottleneck_forward.1} parent=1 // loop_header
      %s17 = sphi 0, %s21
      %p18 = scmp.ge.s32.totalorder %s17, 6
      %s24 = sphi 0, %s36
      %s25 = sphi 0, %s32
      %s26 = sphi 0, %s24
      %s27 = sphi 0, %s25
      %s28 = sphi 0, %s26
      %s29 = sphi 0, %s27
      %s41 = sphi 0, %s43
      %s44 = sphi 0, %s41
      %s45 = sphi 0, %s44
      %s61 = sphi 0, %s45
      %s69 = sphi 0, %s71
      %s72 = sphi 0, %s69
      %s73 = sphi 0, %s72
      %s89 = sphi 0, %s73
      %s93 = sphi 0, %s93
      %s95 = sphi 0, %s93
      %s96 = sphi 0, %s95
      %s110 = sphi 0, %s96
      %s114 = sphi 0, %s114
      %s116 = sphi 0, %s114
      %s117 = sphi 0, %s116
      %s131 = sphi 0, %s117
      %s135 = sphi 0, %s135
      %s137 = sphi 0, %s135
      %s138 = sphi 0, %s137
      %s152 = sphi 0, %s138
      %s156 = sphi 0, %s156
      %s158 = sphi 0, %s156
      %s159 = sphi 0, %s158
      %s173 = sphi 0, %s159
      %s177 = sphi 0, %s177
      %s179 = sphi 0, %s177
      %s180 = sphi 0, %s179
      %s194 = sphi 0, %s180
      %s198 = sphi 0, %s198
      %s200 = sphi 0, %s198
      %s201 = sphi 0, %s200
      %s215 = sphi 0, %s201
      %s223 = sphi 0, %s225
      %s226 = sphi 0, %s223
      %s227 = sphi 0, %s226
      %s243 = sphi 0, %s227
    $region4: #{bottleneck_forward.1} parent=1 // loop_header_branch
      %20 = sbr.rel (%p18) target = $region8
    $region5: #{bottleneck_forward.1} parent=1 // loop_body
      %s22 = ssub.s32 %s17, 1
      %s23 = ssub.s32 %s17, 2
      %s30 = sadd.s32 1, %s25
      %p31 = scmp.ge.s32.totalorder %s30, 2
      %s32 = scalar_select %p31, 0, %s30
      %s33 = sadd.s32 1, %s24
      %s34 = scalar_select %p31, %s33, %s24
      %p35 = scmp.ge.s32.totalorder %s34, 2
      %s36 = scalar_select %p35, 0, %s34
      %s37 = ssub.s32 %s24, %s36
      %s38 = ssub.s32 %s25, %s32
      %s39 = sor.u32 %s37, %s38
      %p40 = scmp.eq.s32.totalorder %s39, 0
      %s42 = sadd.s32 %s41, 1
      %s43 = scalar_select %p40, %s41, %s42
      %p46 = pneg %p40
      %p47 = scmp.eq.s32.totalorder %s17, 3
      %p48 = por %p46, %p47
      %p49 = scmp.ne.s32.totalorder %s41, %s44
      %p50 = scmp.eq.s32.totalorder %s17, 0
      %p51 = por %p49, %p50
      %p52 = scmp.ne.s32.totalorder %s41, %s44
      %p53 = scmp.eq.s32.totalorder %s22, 3
      %p54 = por %p52, %p53
      %p55 = scmp.ne.s32.totalorder %s44, %s45
      %p56 = scmp.eq.s32.totalorder %s22, 0
      %p57 = por %p55, %p56
      %p58 = scmp.ne.s32.totalorder %s44, %s45
      %p59 = scmp.eq.s32.totalorder %s23, 3
      %p60 = por %p58, %p59
      %p62 = scmp.ne.s32.totalorder %s45, %s61
      %p63 = scmp.eq.s32.totalorder %s23, 0
      %p64 = por %p62, %p63
      %s65 = ssub.s32 %s24, %s36
      %s66 = ssub.s32 %s25, %s32
      %s67 = sor.u32 %s65, %s66
      %p68 = scmp.eq.s32.totalorder %s67, 0
      %s70 = sadd.s32 %s69, 1
      %s71 = scalar_select %p68, %s69, %s70
      %p74 = pneg %p68
      %p75 = scmp.eq.s32.totalorder %s17, 3
      %p76 = por %p74, %p75
      %p77 = scmp.ne.s32.totalorder %s69, %s72
      %p78 = scmp.eq.s32.totalorder %s17, 0
      %p79 = por %p77, %p78
      %p80 = scmp.ne.s32.totalorder %s69, %s72
      %p81 = scmp.eq.s32.totalorder %s22, 3
      %p82 = por %p80, %p81
      %p83 = scmp.ne.s32.totalorder %s72, %s73
      %p84 = scmp.eq.s32.totalorder %s22, 0
      %p85 = por %p83, %p84
      %p86 = scmp.ne.s32.totalorder %s72, %s73
      %p87 = scmp.eq.s32.totalorder %s23, 3
      %p88 = por %p86, %p87
      %p90 = scmp.ne.s32.totalorder %s73, %s89
      %p91 = scmp.eq.s32.totalorder %s23, 0
      %p92 = por %p90, %p91
      %s94 = sadd.s32 %s93, 1
      %p97 = scmp.eq.s32.totalorder %s17, 3
      %p98 = scmp.ne.s32.totalorder %s93, %s95
      %p99 = scmp.eq.s32.totalorder %s17, 0
      %p100 = por %p98, %p99
      %p101 = scmp.ne.s32.totalorder %s93, %s95
      %p102 = scmp.eq.s32.totalorder %s22, 3
      %p103 = por %p101, %p102
      %p104 = scmp.ne.s32.totalorder %s95, %s96
      %p105 = scmp.eq.s32.totalorder %s22, 0
      %p106 = por %p104, %p105
      %p107 = scmp.ne.s32.totalorder %s95, %s96
      %p108 = scmp.eq.s32.totalorder %s23, 3
      %p109 = por %p107, %p108
      %p111 = scmp.ne.s32.totalorder %s96, %s110
      %p112 = scmp.eq.s32.totalorder %s23, 0
      %p113 = por %p111, %p112
      %s115 = sadd.s32 %s114, 1
      %p118 = scmp.eq.s32.totalorder %s17, 3
      %p119 = scmp.ne.s32.totalorder %s114, %s116
      %p120 = scmp.eq.s32.totalorder %s17, 0
      %p121 = por %p119, %p120
      %p122 = scmp.ne.s32.totalorder %s114, %s116
      %p123 = scmp.eq.s32.totalorder %s22, 3
      %p124 = por %p122, %p123
      %p125 = scmp.ne.s32.totalorder %s116, %s117
      %p126 = scmp.eq.s32.totalorder %s22, 0
      %p127 = por %p125, %p126
      %p128 = scmp.ne.s32.totalorder %s116, %s117
      %p129 = scmp.eq.s32.totalorder %s23, 3
      %p130 = por %p128, %p129
      %p132 = scmp.ne.s32.totalorder %s117, %s131
      %p133 = scmp.eq.s32.totalorder %s23, 0
      %p134 = por %p132, %p133
      %s136 = sadd.s32 %s135, 1
      %p139 = scmp.eq.s32.totalorder %s17, 3
      %p140 = scmp.ne.s32.totalorder %s135, %s137
      %p141 = scmp.eq.s32.totalorder %s17, 0
      %p142 = por %p140, %p141
      %p143 = scmp.ne.s32.totalorder %s135, %s137
      %p144 = scmp.eq.s32.totalorder %s22, 3
      %p145 = por %p143, %p144
      %p146 = scmp.ne.s32.totalorder %s137, %s138
      %p147 = scmp.eq.s32.totalorder %s22, 0
      %p148 = por %p146, %p147
      %p149 = scmp.ne.s32.totalorder %s137, %s138
      %p150 = scmp.eq.s32.totalorder %s23, 3
      %p151 = por %p149, %p150
      %p153 = scmp.ne.s32.totalorder %s138, %s152
      %p154 = scmp.eq.s32.totalorder %s23, 0
      %p155 = por %p153, %p154
      %s157 = sadd.s32 %s156, 1
      %p160 = scmp.eq.s32.totalorder %s17, 3
      %p161 = scmp.ne.s32.totalorder %s156, %s158
      %p162 = scmp.eq.s32.totalorder %s17, 0
      %p163 = por %p161, %p162
      %p164 = scmp.ne.s32.totalorder %s156, %s158
      %p165 = scmp.eq.s32.totalorder %s22, 3
      %p166 = por %p164, %p165
      %p167 = scmp.ne.s32.totalorder %s158, %s159
      %p168 = scmp.eq.s32.totalorder %s22, 0
      %p169 = por %p167, %p168
      %p170 = scmp.ne.s32.totalorder %s158, %s159
      %p171 = scmp.eq.s32.totalorder %s23, 3
      %p172 = por %p170, %p171
      %p174 = scmp.ne.s32.totalorder %s159, %s173
      %p175 = scmp.eq.s32.totalorder %s23, 0
      %p176 = por %p174, %p175
      %s178 = sadd.s32 %s177, 1
      %p181 = scmp.eq.s32.totalorder %s17, 3
      %p182 = scmp.ne.s32.totalorder %s177, %s179
      %p183 = scmp.eq.s32.totalorder %s17, 0
      %p184 = por %p182, %p183
      %p185 = scmp.ne.s32.totalorder %s177, %s179
      %p186 = scmp.eq.s32.totalorder %s22, 3
      %p187 = por %p185, %p186
      %p188 = scmp.ne.s32.totalorder %s179, %s180
      %p189 = scmp.eq.s32.totalorder %s22, 0
      %p190 = por %p188, %p189
      %p191 = scmp.ne.s32.totalorder %s179, %s180
      %p192 = scmp.eq.s32.totalorder %s23, 3
      %p193 = por %p191, %p192
      %p195 = scmp.ne.s32.totalorder %s180, %s194
      %p196 = scmp.eq.s32.totalorder %s23, 0
      %p197 = por %p195, %p196
      %s199 = sadd.s32 %s198, 1
      %p202 = scmp.eq.s32.totalorder %s17, 3
      %p203 = scmp.ne.s32.totalorder %s198, %s200
      %p204 = scmp.eq.s32.totalorder %s17, 0
      %p205 = por %p203, %p204
      %p206 = scmp.ne.s32.totalorder %s198, %s200
      %p207 = scmp.eq.s32.totalorder %s22, 3
      %p208 = por %p206, %p207
      %p209 = scmp.ne.s32.totalorder %s200, %s201
      %p210 = scmp.eq.s32.totalorder %s22, 0
      %p211 = por %p209, %p210
      %p212 = scmp.ne.s32.totalorder %s200, %s201
      %p213 = scmp.eq.s32.totalorder %s23, 3
      %p214 = por %p212, %p213
      %p216 = scmp.ne.s32.totalorder %s201, %s215
      %p217 = scmp.eq.s32.totalorder %s23, 0
      %p218 = por %p216, %p217
      %s219 = ssub.s32 %s24, %s36
      %s220 = ssub.s32 %s25, %s32
      %s221 = sor.u32 %s219, %s220
      %p222 = scmp.eq.s32.totalorder %s221, 0
      %s224 = sadd.s32 %s223, 1
      %s225 = scalar_select %p222, %s223, %s224
      %p228 = pneg %p222
      %p229 = scmp.eq.s32.totalorder %s17, 3
      %p230 = por %p228, %p229
      %p231 = scmp.ne.s32.totalorder %s223, %s226
      %p232 = scmp.eq.s32.totalorder %s17, 0
      %p233 = por %p231, %p232
      %p234 = scmp.ne.s32.totalorder %s223, %s226
      %p235 = scmp.eq.s32.totalorder %s22, 3
      %p236 = por %p234, %p235
      %p237 = scmp.ne.s32.totalorder %s226, %s227
      %p238 = scmp.eq.s32.totalorder %s22, 0
      %p239 = por %p237, %p238
      %p240 = scmp.ne.s32.totalorder %s226, %s227
      %p241 = scmp.eq.s32.totalorder %s23, 3
      %p242 = por %p240, %p241
      %p244 = scmp.ne.s32.totalorder %s227, %s243
      %p245 = scmp.eq.s32.totalorder %s23, 0
      %p246 = por %p244, %p245
      %p247 = scmp.le.s32.totalorder 1, %s17
      %p248 = scmp.lt.s32.totalorder %s17, 5
      %p249 = pnand %p247, %p248
      %p250 = pneg %p249
      // Predicated region
      $region9: #{bottleneck_forward.1} parent=5 // pred_check
        _
      $region10: #{bottleneck_forward.1} parent=5 // pred_check_branch
        %252 = sbr.rel (%p249) target = $region12
      $region11: #{bottleneck_forward.1} parent=5 // pred_region
        %s253 = ssub.s32 %s17, 1
        // Predicated region
        $region13: #{bottleneck_forward.1} parent=11 // pred_check
          %p254 = pneg %p106
        $region14: #{bottleneck_forward.1} parent=11 // pred_check_branch
          %256 = sbr.rel (%p254) target = $region16
        $region15: #{bottleneck_forward.1} parent=11 // pred_region
          _
        $region16: #{bottleneck_forward.1} parent=11 // pred_fallthru
          _
        // Predicated region
        $region17: #{bottleneck_forward.1} parent=11 // pred_check
          %p257 = pneg %p127
        $region18: #{bottleneck_forward.1} parent=11 // pred_check_branch
          %259 = sbr.rel (%p257) target = $region20
        $region19: #{bottleneck_forward.1} parent=11 // pred_region
          _
        $region20: #{bottleneck_forward.1} parent=11 // pred_fallthru
          _
        // Predicated region
        $region21: #{bottleneck_forward.1} parent=11 // pred_check
          %p260 = pneg %p148
        $region22: #{bottleneck_forward.1} parent=11 // pred_check_branch
          %262 = sbr.rel (%p260) target = $region24
        $region23: #{bottleneck_forward.1} parent=11 // pred_region
          _
        $region24: #{bottleneck_forward.1} parent=11 // pred_fallthru
          _
        // Predicated region
        $region25: #{bottleneck_forward.1} parent=11 // pred_check
          %p263 = pneg %p169
        $region26: #{bottleneck_forward.1} parent=11 // pred_check_branch
          %265 = sbr.rel (%p263) target = $region28
        $region27: #{bottleneck_forward.1} parent=11 // pred_region
          _
        $region28: #{bottleneck_forward.1} parent=11 // pred_fallthru
          _
        // Predicated region
        $region29: #{bottleneck_forward.1} parent=11 // pred_check
          %p266 = pneg %p190
        $region30: #{bottleneck_forward.1} parent=11 // pred_check_branch
          %268 = sbr.rel (%p266) target = $region32
        $region31: #{bottleneck_forward.1} parent=11 // pred_region
          _
        $region32: #{bottleneck_forward.1} parent=11 // pred_fallthru
          _
        // Predicated region
        $region33: #{bottleneck_forward.1} parent=11 // pred_check
          %p269 = pneg %p211
        $region34: #{bottleneck_forward.1} parent=11 // pred_check_branch
          %271 = sbr.rel (%p269) target = $region36
        $region35: #{bottleneck_forward.1} parent=11 // pred_region
          _
        $region36: #{bottleneck_forward.1} parent=11 // pred_fallthru
          _
      $region12: #{bottleneck_forward.1} parent=5 // pred_fallthru
        _
      %p272 = scmp.lt.s32.totalorder %s17, 4
      // Predicated region
      $region37: #{bottleneck_forward.1} parent=5 // pred_check
        %p273 = pneg %p272
      $region38: #{bottleneck_forward.1} parent=5 // pred_check_branch
        %275 = sbr.rel (%p273) target = $region40
      $region39: #{bottleneck_forward.1} parent=5 // pred_region
        // Predicated region
        $region41: #{bottleneck_forward.1} parent=39 // pred_check
          %p276 = pneg %p51
        $region42: #{bottleneck_forward.1} parent=39 // pred_check_branch
          %278 = sbr.rel (%p276) target = $region44
        $region43: #{bottleneck_forward.1} parent=39 // pred_region
          %s279 = smul.u32 8, %s25
          %p280 = scmp.lt.s32.totalorder %s24, 1
          %s281 = scalar_select %p280, %s24, 1
          %p282 = scmp.lt.s32.totalorder %s279, 15
          %s283 = scalar_select %p282, %s279, 15
          %s284 = smul.addr %s283, 2
          %s285 = smul.addr %s281, 32
          %s286 = sadd.s32 %s284, %s285
          %s287 = smul.addr %s286, 4
          %s288 = scalar_lea.vmem %s0, %s287
          %s289 = smul.u32 8, %s25
        $region44: #{bottleneck_forward.1} parent=39 // pred_fallthru
          _
        // Predicated region
        $region45: #{bottleneck_forward.1} parent=39 // pred_check
          %p290 = pneg %p79
        $region46: #{bottleneck_forward.1} parent=39 // pred_check_branch
          %292 = sbr.rel (%p290) target = $region48
        $region47: #{bottleneck_forward.1} parent=39 // pred_region
          %p293 = scmp.lt.s32.totalorder %s24, 1
          %s294 = scalar_select %p293, %s24, 1
          %p295 = scmp.lt.s32.totalorder %s25, 1
          %s296 = scalar_select %p295, %s25, 1
          %s297 = smul.addr %s296, 4
          %s298 = smul.addr %s294, 8
          %s299 = sadd.s32 %s297, %s298
          %s300 = smul.addr %s299, 4
          %s301 = scalar_lea.vmem %s1, %s300
        $region48: #{bottleneck_forward.1} parent=39 // pred_fallthru
          _
      $region40: #{bottleneck_forward.1} parent=5 // pred_fallthru
        _
      %p302 = scmp.le.s32.totalorder 1, %s17
      %p303 = scmp.lt.s32.totalorder %s17, 5
      %p304 = pnand %p302, %p303
      %p305 = pneg %p304
      // Predicated region
      $region49: #{bottleneck_forward.1} parent=5 // pred_check
        _
      $region50: #{bottleneck_forward.1} parent=5 // pred_check_branch
        %307 = sbr.rel (%p304) target = $region52
      $region51: #{bottleneck_forward.1} parent=5 // pred_region
        %s308 = ssub.s32 %s17, 1
        %s309 = smul.u32 8, %s27
        %p310 = scmp.lt.s32.totalorder %s26, 1
        %s311 = scalar_select %p310, %s26, 1
        %p312 = scmp.lt.s32.totalorder %s309, 15
        %s313 = scalar_select %p312, %s309, 15
        %s314 = smul.addr %s313, 2
        %s315 = smul.addr %s311, 32
        %s316 = sadd.s32 %s314, %s315
        %s317 = smul.addr %s316, 4
        %s318 = scalar_lea.vmem %s0, %s317
        %p319 = pneg %p57
        %p320 = pneg %p54
        %p321 = scmp.lt.s32.totalorder %s26, 1
        %s322 = scalar_select %p321, %s26, 1
        %p323 = scmp.lt.s32.totalorder %s27, 1
        %s324 = scalar_select %p323, %s27, 1
        %s325 = smul.addr %s324, 4
        %s326 = smul.addr %s322, 8
        %s327 = sadd.s32 %s325, %s326
        %s328 = smul.addr %s327, 4
        %s329 = scalar_lea.vmem %s1, %s328
        %p330 = pneg %p85
        %p331 = pneg %p82
        %p332 = pneg %p106
        %p333 = pneg %p103
        %p334 = pneg %p127
        %p335 = pneg %p124
        %p336 = pneg %p148
        %p337 = pneg %p145
        %p338 = pneg %p169
        %p339 = pneg %p166
        %p340 = pneg %p190
        %p341 = pneg %p187
        %p342 = pneg %p211
        %p343 = pneg %p208
        %p344 = pneg %p239
        %p345 = pneg %p236
        %s346 = sand.u32 %s226, 1
        %s347 = scalar_lea.sflag [#allocation4], %s346
        %s348 = sand.u32 %s226, 1
        %s349 = smul.addr %s348, 64
        %s350 = scalar_lea.vmem [#allocation3], %s349
        %s351 = smul.u32 8, %s27
        %p352 = scmp.lt.s32.totalorder %s26, 1
        %s353 = scalar_select %p352, %s26, 1
        %p354 = scmp.lt.s32.totalorder %s351, 15
        %s355 = scalar_select %p354, %s351, 15
        %s356 = smul.addr %s355, 2
        %s357 = smul.addr %s353, 32
        %s358 = sadd.s32 %s356, %s357
        %s359 = smul.addr %s358, 4
        %s360 = scalar_lea.vmem %s0, %s359
        %s361 = smul.u32 8, %s27
        %p362 = scmp.lt.s32.totalorder %s26, 1
        %s363 = scalar_select %p362, %s26, 1
        %p364 = scmp.lt.s32.totalorder %s27, 1
        %s365 = scalar_select %p364, %s27, 1
        %s366 = smul.addr %s365, 4
        %s367 = smul.addr %s363, 8
        %s368 = sadd.s32 %s366, %s367
        %s369 = smul.addr %s368, 4
        %s370 = scalar_lea.vmem %s1, %s369
        %s371 = smul.u32 8, %s27
        %v373 = vld [vmem:[%s2] sm:$0xf]
        %v374 = vld [vmem:[%s2 + $0x4] sm:$0xf]
        %v375 = vld [vmem:[%s2 + $0x8] sm:$0xf]
        %v376 = vld [vmem:[%s2 + $0xc] sm:$0xf]
        %v377 = vld [vmem:[%s2 + $0x10] sm:$0xf]
        %v378 = vld [vmem:[%s2 + $0x14] sm:$0xf]
        %v379 = vld [vmem:[%s2 + $0x18] sm:$0xf]
        %v380 = vld [vmem:[%s2 + $0x1c] sm:$0xf]
        %v381 = vld [vmem:[%s2 + $0x20] sm:$0xf]
        %v382 = vld [vmem:[%s2 + $0x24] sm:$0xf]
        %v383 = vld [vmem:[%s2 + $0x28] sm:$0xf]
        %v384 = vld [vmem:[%s2 + $0x2c] sm:$0xf]
        %v385 = vld [vmem:[%s2 + $0x30] sm:$0xf]
        %v386 = vld [vmem:[%s2 + $0x34] sm:$0xf]
        %v387 = vld [vmem:[%s2 + $0x38] sm:$0xf]
        %v388 = vld [vmem:[%s2 + $0x3c] sm:$0xf]
        %v389 = vld [vmem:[%s5] sm:$0x1]
        %v390 = vld [vmem:[%s6] sm:$0x1]
        %v391 = vld [vmem:[%s7] sm:$0x1]
        %v392 = vld [vmem:[%s360] sm:$0xf]
        %v393 = vld [vmem:[%s360 + $0x4] sm:$0xf]
        %v394 = vld [vmem:[%s360 + $0x8] sm:$0xf]
        %v395 = vld [vmem:[%s360 + $0xc] sm:$0xf]
        %v396 = vld [vmem:[%s360 + $0x10] sm:$0xf]
        %v397 = vld [vmem:[%s360 + $0x14] sm:$0xf]
        %v398 = vld [vmem:[%s360 + $0x18] sm:$0xf]
        %v399 = vld [vmem:[%s360 + $0x1c] sm:$0xf]
        %v400 = vld [vmem:[%s360 + $0x20] sm:$0xf]
        %v401 = vld [vmem:[%s360 + $0x24] sm:$0xf]
        %v402 = vld [vmem:[%s360 + $0x28] sm:$0xf]
        %v403 = vld [vmem:[%s360 + $0x2c] sm:$0xf]
        %v404 = vld [vmem:[%s360 + $0x30] sm:$0xf]
        %v405 = vld [vmem:[%s360 + $0x34] sm:$0xf]
        %v406 = vld [vmem:[%s360 + $0x38] sm:$0xf]
        %v407 = vld [vmem:[%s360 + $0x3c] sm:$0xf]
        %v409 = vperm.slane %v389, 0
        %v427 = vunpack.c.l.b16 %v392
        %v428 = vunpack.c.l.b16 %v393
        %v429 = vunpack.c.l.b16 %v394
        %v430 = vunpack.c.l.b16 %v395
        %v431 = vunpack.c.l.b16 %v396
        %v432 = vunpack.c.l.b16 %v397
        %v433 = vunpack.c.l.b16 %v398
        %v434 = vunpack.c.l.b16 %v399
        %v435 = vunpack.c.l.b16 %v400
        %v436 = vunpack.c.l.b16 %v401
        %v437 = vunpack.c.l.b16 %v402
        %v438 = vunpack.c.l.b16 %v403
        %v439 = vunpack.c.l.b16 %v404
        %v440 = vunpack.c.l.b16 %v405
        %v441 = vunpack.c.l.b16 %v406
        %v442 = vunpack.c.l.b16 %v407
        %v443 = vpack.c.b16 %v428, %v427
        %v444 = vpack.c.b16 %v430, %v429
        %v445 = vpack.c.b16 %v432, %v431
        %v446 = vpack.c.b16 %v434, %v433
        %v447 = vpack.c.b16 %v436, %v435
        %v448 = vpack.c.b16 %v438, %v437
        %v449 = vpack.c.b16 %v440, %v439
        %v450 = vpack.c.b16 %v442, %v441
        %v475 = vunpack.c.l.b16 %v373
        %v476 = vunpack.c.l.b16 %v374
        %v477 = vunpack.c.l.b16 %v375
        %v478 = vunpack.c.l.b16 %v376
        %v479 = vunpack.c.l.b16 %v377
        %v480 = vunpack.c.l.b16 %v378
        %v481 = vunpack.c.l.b16 %v379
        %v482 = vunpack.c.l.b16 %v380
        %v483 = vunpack.c.l.b16 %v381
        %v484 = vunpack.c.l.b16 %v382
        %v485 = vunpack.c.l.b16 %v383
        %v486 = vunpack.c.l.b16 %v384
        %v487 = vunpack.c.l.b16 %v385
        %v488 = vunpack.c.l.b16 %v386
        %v489 = vunpack.c.l.b16 %v387
        %v490 = vunpack.c.l.b16 %v388
        %v491 = vpack.c.b16 %v476, %v475
        %v492 = vpack.c.b16 %v478, %v477
        %v493 = vpack.c.b16 %v480, %v479
        %v494 = vpack.c.b16 %v482, %v481
        %v495 = vpack.c.b16 %v484, %v483
        %v496 = vpack.c.b16 %v486, %v485
        %v497 = vpack.c.b16 %v488, %v487
        %v498 = vpack.c.b16 %v490, %v489
        %507 = vmatpush.bf16.msra.mxu0 %v498
        %508 = vmatpush.bf16.msra.mxu0 %v497
        %509 = vmatpush.bf16.msra.mxu0 %v496
        %510 = vmatpush.bf16.msra.mxu0 %v495
        %511 = vmatpush.bf16.msra.mxu0 %v494
        %512 = vmatpush.bf16.msra.mxu0 %v493
        %513 = vmatpush.bf16.msra.mxu0 %v492
        %514 = vmatpush.bf16.msra.mxu0 %v491
        %515 = vmatmul.bf16.gmra.mxu0 %v443
        %v516 = vpop.f32.mrf.mxu0
        %v517 = vadd.f32 %v409, %v516
        %v518 = vpop.f32.mrf.mxu0
        %v519 = vadd.f32 %v409, %v518
        %520 = vmatmul.bf16.gmra.mxu0 %v444
        %v521 = vpop.f32.mrf.mxu0
        %v522 = vadd.f32 %v409, %v521
        %v523 = vpop.f32.mrf.mxu0
        %v524 = vadd.f32 %v409, %v523
        %525 = vmatmul.bf16.gmra.mxu0 %v445
        %v526 = vpop.f32.mrf.mxu0
        %v527 = vadd.f32 %v409, %v526
        %v528 = vpop.f32.mrf.mxu0
        %v529 = vadd.f32 %v409, %v528
        %530 = vmatmul.bf16.gmra.mxu0 %v446
        %v531 = vpop.f32.mrf.mxu0
        %v532 = vadd.f32 %v409, %v531
        %v533 = vpop.f32.mrf.mxu0
        %v534 = vadd.f32 %v409, %v533
        %535 = vmatmul.bf16.gmra.mxu0 %v447
        %v536 = vpop.f32.mrf.mxu0
        %v537 = vadd.f32 %v409, %v536
        %v538 = vpop.f32.mrf.mxu0
        %v539 = vadd.f32 %v409, %v538
        %540 = vmatmul.bf16.gmra.mxu0 %v448
        %v541 = vpop.f32.mrf.mxu0
        %v542 = vadd.f32 %v409, %v541
        %v543 = vpop.f32.mrf.mxu0
        %v544 = vadd.f32 %v409, %v543
        %545 = vmatmul.bf16.gmra.mxu0 %v449
        %v546 = vpop.f32.mrf.mxu0
        %v547 = vadd.f32 %v409, %v546
        %v548 = vpop.f32.mrf.mxu0
        %v549 = vadd.f32 %v409, %v548
        %550 = vmatmul.bf16.gmra.mxu0 %v450
        %v551 = vpop.f32.mrf.mxu0
        %v552 = vadd.f32 %v409, %v551
        %v553 = vpop.f32.mrf.mxu0
        %v554 = vadd.f32 %v409, %v553
        %555 = vdwg.mxu0
        %v556 = vmax.f32 %v517, 0.0
        %v557 = vmax.f32 %v519, 0.0
        %v558 = vmax.f32 %v522, 0.0
        %v559 = vmax.f32 %v524, 0.0
        %v560 = vmax.f32 %v527, 0.0
        %v561 = vmax.f32 %v529, 0.0
        %v562 = vmax.f32 %v532, 0.0
        %v563 = vmax.f32 %v534, 0.0
        %v564 = vmax.f32 %v537, 0.0
        %v565 = vmax.f32 %v539, 0.0
        %v566 = vmax.f32 %v542, 0.0
        %v567 = vmax.f32 %v544, 0.0
        %v568 = vmax.f32 %v547, 0.0
        %v569 = vmax.f32 %v549, 0.0
        %v570 = vmax.f32 %v552, 0.0
        %v571 = vmax.f32 %v554, 0.0
        %v572 = vpack.c.bf16 %v556, %v556
        %v573 = vpack.c.bf16 %v557, %v557
        %v574 = vpack.c.bf16 %v558, %v558
        %v575 = vpack.c.bf16 %v559, %v559
        %v576 = vpack.c.bf16 %v560, %v560
        %v577 = vpack.c.bf16 %v561, %v561
        %v578 = vpack.c.bf16 %v562, %v562
        %v579 = vpack.c.bf16 %v563, %v563
        %v580 = vpack.c.bf16 %v564, %v564
        %v581 = vpack.c.bf16 %v565, %v565
        %v582 = vpack.c.bf16 %v566, %v566
        %v583 = vpack.c.bf16 %v567, %v567
        %v584 = vpack.c.bf16 %v568, %v568
        %v585 = vpack.c.bf16 %v569, %v569
        %v586 = vpack.c.bf16 %v570, %v570
        %v587 = vpack.c.bf16 %v571, %v571
        %s588 = scalar_lea.vmem [#allocation2], 16
        %589 = vst [vmem:[%s588 + $0x4] sm:$0xf] %v572
        %590 = vst [vmem:[%s588 + $0x8] sm:$0xf] %v573
        %591 = vst [vmem:[%s588 + $0x14] sm:$0xf] %v574
        %592 = vst [vmem:[%s588 + $0x18] sm:$0xf] %v575
        %593 = vst [vmem:[%s588 + $0x24] sm:$0xf] %v576
        %594 = vst [vmem:[%s588 + $0x28] sm:$0xf] %v577
        %595 = vst [vmem:[%s588 + $0x34] sm:$0xf] %v578
        %596 = vst [vmem:[%s588 + $0x38] sm:$0xf] %v579
        %597 = vst [vmem:[%s588 + $0x44] sm:$0xf] %v580
        %598 = vst [vmem:[%s588 + $0x48] sm:$0xf] %v581
        %599 = vst [vmem:[%s588 + $0x54] sm:$0xf] %v582
        %600 = vst [vmem:[%s588 + $0x58] sm:$0xf] %v583
        %601 = vst [vmem:[%s588 + $0x64] sm:$0xf] %v584
        %602 = vst [vmem:[%s588 + $0x68] sm:$0xf] %v585
        %603 = vst [vmem:[%s588 + $0x74] sm:$0xf] %v586
        %604 = vst [vmem:[%s588 + $0x78] sm:$0xf] %v587
        %v605 = vld [vmem:[%s370] sm:$0xf]
        %v606 = vld [vmem:[%s370 + $0x4] sm:$0xf]
        %v607 = vld [vmem:[%s370 + $0x8] sm:$0xf]
        %v608 = vld [vmem:[%s370 + $0xc] sm:$0xf]
        %v613 = vunpack.c.l.b16 %v605
        %v614 = vunpack.c.l.b16 %v606
        %v615 = vunpack.c.l.b16 %v607
        %v616 = vunpack.c.l.b16 %v608
        %v617 = vpack.c.b16 %v614, %v613
        %v618 = vpack.c.b16 %v616, %v615
        %621 = vmatpush.bf16.msra.mxu0 %v498
        %622 = vmatpush.bf16.msra.mxu0 %v497
        %623 = vmatpush.bf16.msra.mxu0 %v496
        %624 = vmatpush.bf16.msra.mxu0 %v495
        %625 = vmatpush.bf16.msra.mxu0 %v494
        %626 = vmatpush.bf16.msra.mxu0 %v493
        %627 = vmatpush.bf16.msra.mxu0 %v492
        %628 = vmatpush.bf16.msra.mxu0 %v491
        %629 = vmatmul.bf16.gmra.mxu0 %v617
        %v630 = vpop.f32.mrf.mxu0
        %v631 = vadd.f32 %v409, %v630
        %v632 = vpop.f32.mrf.mxu0
        %v633 = vadd.f32 %v409, %v632
        %634 = vmatmul.bf16.gmra.mxu0 %v618
        %v635 = vpop.f32.mrf.mxu0
        %v636 = vadd.f32 %v409, %v635
        %v637 = vpop.f32.mrf.mxu0
        %v638 = vadd.f32 %v409, %v637
        %639 = vdwg.mxu0
        %v640 = vmax.f32 %v631, 0.0
        %v641 = vmax.f32 %v633, 0.0
        %v642 = vmax.f32 %v636, 0.0
        %v643 = vmax.f32 %v638, 0.0
        %p644 = scmp.gt.s32.totalorder %s27, 0
        %s645 = scalar_select %p644, 1, 0
        %v646 = vstv %s645
        %vm647 = vcmp.eq.s32.totalorder %v646, 1
        %v648 = vsel %vm647, %v640, 0.0
        %v649 = vsel %vm647, %v641, 0.0
        %v650 = vpack.c.bf16 %v648, %v648
        %v651 = vpack.c.bf16 %v649, %v649
        %p652 = scmp.lt.s32.totalorder %s27, 1
        %s653 = scalar_select %p652, 1, 0
        %v654 = vstv %s653
        %vm655 = vcmp.eq.s32.totalorder %v654, 1
        %v656 = vsel %vm655, %v642, 0.0
        %v657 = vsel %vm655, %v643, 0.0
        %v658 = vpack.c.bf16 %v656, %v656
        %v659 = vpack.c.bf16 %v657, %v657
        %660 = vst [vmem:[#allocation2 + $0x4] sm:$0xf] %v650
        %661 = vst [vmem:[#allocation2 + $0x8] sm:$0xf] %v651
        %s662 = scalar_lea.vmem [#allocation2], 144
        %663 = vst [vmem:[%s662 + $0x4] sm:$0xf] %v658
        %664 = vst [vmem:[%s662 + $0x8] sm:$0xf] %v659
        %665 = vst [vmem:[#allocation2] sm:$0xf] 0
        %666 = vst [vmem:[#allocation2 + $0x10] sm:$0xf] 0
        %667 = vst [vmem:[#allocation2 + $0x20] sm:$0xf] 0
        %668 = vst [vmem:[#allocation2 + $0x30] sm:$0xf] 0
        %669 = vst [vmem:[#allocation2 + $0x40] sm:$0xf] 0
        %670 = vst [vmem:[#allocation2 + $0x50] sm:$0xf] 0
        %671 = vst [vmem:[#allocation2 + $0x60] sm:$0xf] 0
        %672 = vst [vmem:[#allocation2 + $0x70] sm:$0xf] 0
        %673 = vst [vmem:[#allocation2 + $0x80] sm:$0xf] 0
        %674 = vst [vmem:[#allocation2 + $0x90] sm:$0xf] 0
        %675 = vst [vmem:[#allocation2 + $0xc] sm:$0xf] 0
        %676 = vst [vmem:[#allocation2 + $0x1c] sm:$0xf] 0
        %677 = vst [vmem:[#allocation2 + $0x2c] sm:$0xf] 0
        %678 = vst [vmem:[#allocation2 + $0x3c] sm:$0xf] 0
        %679 = vst [vmem:[#allocation2 + $0x4c] sm:$0xf] 0
        %680 = vst [vmem:[#allocation2 + $0x5c] sm:$0xf] 0
        %681 = vst [vmem:[#allocation2 + $0x6c] sm:$0xf] 0
        %682 = vst [vmem:[#allocation2 + $0x7c] sm:$0xf] 0
        %683 = vst [vmem:[#allocation2 + $0x8c] sm:$0xf] 0
        %684 = vst [vmem:[#allocation2 + $0x9c] sm:$0xf] 0
        %v685 = vld [vmem:[#allocation2] sm:$0x8]
        %v686 = vld [vmem:[#allocation2 + $0x4] sm:$0xf]
        %v687 = vld [vmem:[#allocation2 + $0x8] sm:$0xf]
        %v688 = vld [vmem:[#allocation2 + $0x10] sm:$0x8]
        %v689 = vld [vmem:[#allocation2 + $0x14] sm:$0xf]
        %v690 = vld [vmem:[#allocation2 + $0x18] sm:$0xf]
        %v691 = vld [vmem:[#allocation2 + $0x20] sm:$0x8]
        %v692 = vld [vmem:[#allocation2 + $0x24] sm:$0xf]
        %v693 = vld [vmem:[#allocation2 + $0x28] sm:$0xf]
        %v694 = vld [vmem:[#allocation2 + $0x30] sm:$0x8]
        %v695 = vld [vmem:[#allocation2 + $0x34] sm:$0xf]
        %v696 = vld [vmem:[#allocation2 + $0x38] sm:$0xf]
        %v697 = vld [vmem:[#allocation2 + $0x40] sm:$0x8]
        %v698 = vld [vmem:[#allocation2 + $0x44] sm:$0xf]
        %v699 = vld [vmem:[#allocation2 + $0x48] sm:$0xf]
        %v700 = vld [vmem:[#allocation2 + $0x50] sm:$0x8]
        %v701 = vld [vmem:[#allocation2 + $0x54] sm:$0xf]
        %v702 = vld [vmem:[#allocation2 + $0x58] sm:$0xf]
        %v703 = vld [vmem:[#allocation2 + $0x60] sm:$0x8]
        %v704 = vld [vmem:[#allocation2 + $0x64] sm:$0xf]
        %v705 = vld [vmem:[#allocation2 + $0x68] sm:$0xf]
        %v706 = vld [vmem:[#allocation2 + $0x70] sm:$0x8]
        %v707 = vld [vmem:[#allocation2 + $0x74] sm:$0xf]
        %v708 = vld [vmem:[#allocation2 + $0x78] sm:$0xf]
        %v709 = vld [vmem:[#allocation2 + $0x80] sm:$0x8]
        %v710 = vld [vmem:[#allocation2 + $0x84] sm:$0xf]
        %v711 = vld [vmem:[#allocation2 + $0x88] sm:$0xf]
        %v712 = vld [vmem:[#allocation2 + $0x90] sm:$0x8]
        %v713 = vld [vmem:[#allocation2 + $0x94] sm:$0xf]
        %v714 = vld [vmem:[#allocation2 + $0x98] sm:$0xf]
        %v715 = vld [vmem:[#allocation2 + $0x4] sm:$0xf]
        %v716 = vld [vmem:[#allocation2 + $0x8] sm:$0xf]
        %v717 = vld [vmem:[#allocation2 + $0xc] sm:$0x1]
        %v718 = vld [vmem:[#allocation2 + $0x14] sm:$0xf]
        %v719 = vld [vmem:[#allocation2 + $0x18] sm:$0xf]
        %v720 = vld [vmem:[#allocation2 + $0x1c] sm:$0x1]
        %v721 = vld [vmem:[#allocation2 + $0x24] sm:$0xf]
        %v722 = vld [vmem:[#allocation2 + $0x28] sm:$0xf]
        %v723 = vld [vmem:[#allocation2 + $0x2c] sm:$0x1]
        %v724 = vld [vmem:[#allocation2 + $0x34] sm:$0xf]
        %v725 = vld [vmem:[#allocation2 + $0x38] sm:$0xf]
        %v726 = vld [vmem:[#allocation2 + $0x3c] sm:$0x1]
        %v727 = vld [vmem:[#allocation2 + $0x44] sm:$0xf]
        %v728 = vld [vmem:[#allocation2 + $0x48] sm:$0xf]
        %v729 = vld [vmem:[#allocation2 + $0x4c] sm:$0x1]
        %v730 = vld [vmem:[#allocation2 + $0x54] sm:$0xf]
        %v731 = vld [vmem:[#allocation2 + $0x58] sm:$0xf]
        %v732 = vld [vmem:[#allocation2 + $0x5c] sm:$0x1]
        %v733 = vld [vmem:[#allocation2 + $0x64] sm:$0xf]
        %v734 = vld [vmem:[#allocation2 + $0x68] sm:$0xf]
        %v735 = vld [vmem:[#allocation2 + $0x6c] sm:$0x1]
        %v736 = vld [vmem:[#allocation2 + $0x74] sm:$0xf]
        %v737 = vld [vmem:[#allocation2 + $0x78] sm:$0xf]
        %v738 = vld [vmem:[#allocation2 + $0x7c] sm:$0x1]
        %v739 = vld [vmem:[#allocation2 + $0x84] sm:$0xf]
        %v740 = vld [vmem:[#allocation2 + $0x88] sm:$0xf]
        %v741 = vld [vmem:[#allocation2 + $0x8c] sm:$0x1]
        %v742 = vld [vmem:[#allocation2 + $0x94] sm:$0xf]
        %v743 = vld [vmem:[#allocation2 + $0x98] sm:$0xf]
        %v744 = vld [vmem:[#allocation2 + $0x9c] sm:$0x1]
        %v769 = vunpack.c.l.b16 %v685
        %v770 = vunpack.c.l.b16 %v686
        %v771 = vunpack.c.l.b16 %v687
        %v772 = vunpack.c.l.b16 %v688
        %v773 = vunpack.c.l.b16 %v689
        %v774 = vunpack.c.l.b16 %v690
        %v775 = vunpack.c.l.b16 %v691
        %v776 = vunpack.c.l.b16 %v692
        %v777 = vunpack.c.l.b16 %v693
        %v778 = vunpack.c.l.b16 %v694
        %v779 = vunpack.c.l.b16 %v695
        %v780 = vunpack.c.l.b16 %v696
        %v781 = vunpack.c.l.b16 %v697
        %v782 = vunpack.c.l.b16 %v698
        %v783 = vunpack.c.l.b16 %v699
        %v784 = vunpack.c.l.b16 %v700
        %v785 = vunpack.c.l.b16 %v701
        %v786 = vunpack.c.l.b16 %v702
        %v787 = vunpack.c.l.b16 %v703
        %v788 = vunpack.c.l.b16 %v704
        %v789 = vunpack.c.l.b16 %v705
        %v790 = vunpack.c.l.b16 %v706
        %v791 = vunpack.c.l.b16 %v707
        %v792 = vunpack.c.l.b16 %v708
        %v793 = vpack.c.b16 %v770, %v769
        %v794 = vpack.c.b16 %v771, %v771
        %v795 = vpack.c.b16 %v773, %v772
        %v796 = vpack.c.b16 %v774, %v774
        %v797 = vpack.c.b16 %v776, %v775
        %v798 = vpack.c.b16 %v777, %v777
        %v799 = vpack.c.b16 %v779, %v778
        %v800 = vpack.c.b16 %v780, %v780
        %v801 = vpack.c.b16 %v782, %v781
        %v802 = vpack.c.b16 %v783, %v783
        %v803 = vpack.c.b16 %v785, %v784
        %v804 = vpack.c.b16 %v786, %v786
        %v805 = vpack.c.b16 %v788, %v787
        %v806 = vpack.c.b16 %v789, %v789
        %v807 = vpack.c.b16 %v791, %v790
        %v808 = vpack.c.b16 %v792, %v792
        %v812 = vunpack.c.l.b16 %v709
        %v813 = vunpack.c.l.b16 %v710
        %v814 = vunpack.c.l.b16 %v711
        %v815 = vpack.c.b16 %v813, %v812
        %v816 = vpack.c.b16 %v814, %v814
        %v820 = vunpack.c.l.b16 %v712
        %v821 = vunpack.c.l.b16 %v713
        %v822 = vunpack.c.l.b16 %v714
        %v823 = vpack.c.b16 %v821, %v820
        %v824 = vpack.c.b16 %v822, %v822
        %v825 = vpack.c.b16 %v771, %v770
        %v826 = vpack.c.b16 %v774, %v773
        %v827 = vpack.c.b16 %v777, %v776
        %v828 = vpack.c.b16 %v780, %v779
        %v829 = vpack.c.b16 %v783, %v782
        %v830 = vpack.c.b16 %v786, %v785
        %v831 = vpack.c.b16 %v789, %v788
        %v832 = vpack.c.b16 %v792, %v791
        %v834 = vshrl.u32 %v825, 16
        %v836 = vrot.slane %v834, 4
        %v837 = vshll.u32 %v825, 16
        %v839 = vrot.slane %v837, 5
        %v840 = vor.u32 %v836, %v839
        %v842 = vshrl.u32 %v826, 16
        %v844 = vrot.slane %v842, 4
        %v845 = vshll.u32 %v826, 16
        %v847 = vrot.slane %v845, 5
        %v848 = vor.u32 %v844, %v847
        %v850 = vshrl.u32 %v827, 16
        %v852 = vrot.slane %v850, 4
        %v853 = vshll.u32 %v827, 16
        %v855 = vrot.slane %v853, 5
        %v856 = vor.u32 %v852, %v855
        %v858 = vshrl.u32 %v828, 16
        %v860 = vrot.slane %v858, 4
        %v861 = vshll.u32 %v828, 16
        %v863 = vrot.slane %v861, 5
        %v864 = vor.u32 %v860, %v863
        %v866 = vshrl.u32 %v829, 16
        %v868 = vrot.slane %v866, 4
        %v869 = vshll.u32 %v829, 16
        %v871 = vrot.slane %v869, 5
        %v872 = vor.u32 %v868, %v871
        %v874 = vshrl.u32 %v830, 16
        %v876 = vrot.slane %v874, 4
        %v877 = vshll.u32 %v830, 16
        %v879 = vrot.slane %v877, 5
        %v880 = vor.u32 %v876, %v879
        %v882 = vshrl.u32 %v831, 16
        %v884 = vrot.slane %v882, 4
        %v885 = vshll.u32 %v831, 16
        %v887 = vrot.slane %v885, 5
        %v888 = vor.u32 %v884, %v887
        %v890 = vshrl.u32 %v832, 16
        %v892 = vrot.slane %v890, 4
        %v893 = vshll.u32 %v832, 16
        %v895 = vrot.slane %v893, 5
        %v896 = vor.u32 %v892, %v895
        %v897 = vpack.c.b16 %v814, %v813
        %v899 = vshrl.u32 %v897, 16
        %v901 = vrot.slane %v899, 4
        %v902 = vshll.u32 %v897, 16
        %v904 = vrot.slane %v902, 5
        %v905 = vor.u32 %v901, %v904
        %v906 = vpack.c.b16 %v822, %v821
        %v908 = vshrl.u32 %v906, 16
        %v910 = vrot.slane %v908, 4
        %v911 = vshll.u32 %v906, 16
        %v913 = vrot.slane %v911, 5
        %v914 = vor.u32 %v910, %v913
        %v939 = vunpack.c.l.b16 %v715
        %v940 = vunpack.c.l.b16 %v716
        %v941 = vunpack.c.l.b16 %v717
        %v942 = vunpack.c.l.b16 %v718
        %v943 = vunpack.c.l.b16 %v719
        %v944 = vunpack.c.l.b16 %v720
        %v945 = vunpack.c.l.b16 %v721
        %v946 = vunpack.c.l.b16 %v722
        %v947 = vunpack.c.l.b16 %v723
        %v948 = vunpack.c.l.b16 %v724
        %v949 = vunpack.c.l.b16 %v725
        %v950 = vunpack.c.l.b16 %v726
        %v951 = vunpack.c.l.b16 %v727
        %v952 = vunpack.c.l.b16 %v728
        %v953 = vunpack.c.l.b16 %v729
        %v954 = vunpack.c.l.b16 %v730
        %v955 = vunpack.c.l.b16 %v731
        %v956 = vunpack.c.l.b16 %v732
        %v957 = vunpack.c.l.b16 %v733
        %v958 = vunpack.c.l.b16 %v734
        %v959 = vunpack.c.l.b16 %v735
        %v960 = vunpack.c.l.b16 %v736
        %v961 = vunpack.c.l.b16 %v737
        %v962 = vunpack.c.l.b16 %v738
        %v963 = vpack.c.b16 %v940, %v939
        %v964 = vpack.c.b16 %v941, %v941
        %v965 = vpack.c.b16 %v943, %v942
        %v966 = vpack.c.b16 %v944, %v944
        %v967 = vpack.c.b16 %v946, %v945
        %v968 = vpack.c.b16 %v947, %v947
        %v969 = vpack.c.b16 %v949, %v948
        %v970 = vpack.c.b16 %v950, %v950
        %v971 = vpack.c.b16 %v952, %v951
        %v972 = vpack.c.b16 %v953, %v953
        %v973 = vpack.c.b16 %v955, %v954
        %v974 = vpack.c.b16 %v956, %v956
        %v975 = vpack.c.b16 %v958, %v957
        %v976 = vpack.c.b16 %v959, %v959
        %v977 = vpack.c.b16 %v961, %v960
        %v978 = vpack.c.b16 %v962, %v962
        %vm979 = vcmask 1042432
        %v980 = vrot.slane %v963, 5
        %v981 = vrot.slane %v964, 5
        %v982 = vsel %vm979, %v980, %v981
        %v983 = vrot.slane %v965, 5
        %v984 = vrot.slane %v966, 5
        %v985 = vsel %vm979, %v983, %v984
        %v986 = vrot.slane %v967, 5
        %v987 = vrot.slane %v968, 5
        %v988 = vsel %vm979, %v986, %v987
        %v989 = vrot.slane %v969, 5
        %v990 = vrot.slane %v970, 5
        %v991 = vsel %vm979, %v989, %v990
        %v992 = vrot.slane %v971, 5
        %v993 = vrot.slane %v972, 5
        %v994 = vsel %vm979, %v992, %v993
        %v995 = vrot.slane %v973, 5
        %v996 = vrot.slane %v974, 5
        %v997 = vsel %vm979, %v995, %v996
        %v998 = vrot.slane %v975, 5
        %v999 = vrot.slane %v976, 5
        %v1000 = vsel %vm979, %v998, %v999
        %v1001 = vrot.slane %v977, 5
        %v1002 = vrot.slane %v978, 5
        %v1003 = vsel %vm979, %v1001, %v1002
        %v1007 = vunpack.c.l.b16 %v739
        %v1008 = vunpack.c.l.b16 %v740
        %v1009 = vunpack.c.l.b16 %v741
        %v1010 = vpack.c.b16 %v1008, %v1007
        %v1011 = vpack.c.b16 %v1009, %v1009
        %v1012 = vrot.slane %v1010, 5
        %v1013 = vrot.slane %v1011, 5
        %v1014 = vsel %vm979, %v1012, %v1013
        %v1018 = vunpack.c.l.b16 %v742
        %v1019 = vunpack.c.l.b16 %v743
        %v1020 = vunpack.c.l.b16 %v744
        %v1021 = vpack.c.b16 %v1019, %v1018
        %v1022 = vpack.c.b16 %v1020, %v1020
        %v1023 = vrot.slane %v1021, 5
        %v1024 = vrot.slane %v1022, 5
        %v1025 = vsel %vm979, %v1023, %v1024
        %vm1026 = vsmask.f32 4352
        %v1028 = vshrl.u32 %v793, 16
        %v1030 = vrot.slane %v1028, 3
        %v1031 = vshll.u32 %v793, 16
        %v1033 = vrot.slane %v1031, 4
        %v1034 = vor.u32 %v1030, %v1033
        %v1036 = vshrl.u32 %v794, 16
        %v1038 = vrot.slane %v1036, 3
        %v1039 = vshll.u32 %v794, 16
        %v1041 = vrot.slane %v1039, 4
        %v1042 = vor.u32 %v1038, %v1041
        %v1043 = vsel %vm1026, %v1034, %v1042
        %v1045 = vshrl.u32 %v795, 16
        %v1047 = vrot.slane %v1045, 3
        %v1048 = vshll.u32 %v795, 16
        %v1050 = vrot.slane %v1048, 4
        %v1051 = vor.u32 %v1047, %v1050
        %v1053 = vshrl.u32 %v796, 16
        %v1055 = vrot.slane %v1053, 3
        %v1056 = vshll.u32 %v796, 16
        %v1058 = vrot.slane %v1056, 4
        %v1059 = vor.u32 %v1055, %v1058
        %v1060 = vsel %vm1026, %v1051, %v1059
        %v1062 = vshrl.u32 %v797, 16
        %v1064 = vrot.slane %v1062, 3
        %v1065 = vshll.u32 %v797, 16
        %v1067 = vrot.slane %v1065, 4
        %v1068 = vor.u32 %v1064, %v1067
        %v1070 = vshrl.u32 %v798, 16
        %v1072 = vrot.slane %v1070, 3
        %v1073 = vshll.u32 %v798, 16
        %v1075 = vrot.slane %v1073, 4
        %v1076 = vor.u32 %v1072, %v1075
        %v1077 = vsel %vm1026, %v1068, %v1076
        %v1079 = vshrl.u32 %v840, 16
        %v1081 = vrot.slane %v1079, 3
        %v1082 = vshll.u32 %v840, 16
        %v1084 = vrot.slane %v1082, 4
        %v1085 = vor.u32 %v1081, %v1084
        %v1086 = vsel %vm1026, %v1085, %v1085
        %v1088 = vshrl.u32 %v848, 16
        %v1090 = vrot.slane %v1088, 3
        %v1091 = vshll.u32 %v848, 16
        %v1093 = vrot.slane %v1091, 4
        %v1094 = vor.u32 %v1090, %v1093
        %v1095 = vsel %vm1026, %v1094, %v1094
        %v1097 = vshrl.u32 %v856, 16
        %v1099 = vrot.slane %v1097, 3
        %v1100 = vshll.u32 %v856, 16
        %v1102 = vrot.slane %v1100, 4
        %v1103 = vor.u32 %v1099, %v1102
        %v1104 = vsel %vm1026, %v1103, %v1103
        %v1106 = vshrl.u32 %v980, 16
        %v1108 = vrot.slane %v1106, 3
        %v1109 = vshll.u32 %v980, 16
        %v1111 = vrot.slane %v1109, 4
        %v1112 = vor.u32 %v1108, %v1111
        %v1114 = vshrl.u32 %v982, 16
        %v1116 = vrot.slane %v1114, 3
        %v1117 = vshll.u32 %v982, 16
        %v1119 = vrot.slane %v1117, 4
        %v1120 = vor.u32 %v1116, %v1119
        %v1121 = vsel %vm1026, %v1112, %v1120
        %v1123 = vshrl.u32 %v983, 16
        %v1125 = vrot.slane %v1123, 3
        %v1126 = vshll.u32 %v983, 16
        %v1128 = vrot.slane %v1126, 4
        %v1129 = vor.u32 %v1125, %v1128
        %v1131 = vshrl.u32 %v985, 16
        %v1133 = vrot.slane %v1131, 3
        %v1134 = vshll.u32 %v985, 16
        %v1136 = vrot.slane %v1134, 4
        %v1137 = vor.u32 %v1133, %v1136
        %v1138 = vsel %vm1026, %v1129, %v1137
        %v1140 = vshrl.u32 %v986, 16
        %v1142 = vrot.slane %v1140, 3
        %v1143 = vshll.u32 %v986, 16
        %v1145 = vrot.slane %v1143, 4
        %v1146 = vor.u32 %v1142, %v1145
        %v1148 = vshrl.u32 %v988, 16
        %v1150 = vrot.slane %v1148, 3
        %v1151 = vshll.u32 %v988, 16
        %v1153 = vrot.slane %v1151, 4
        %v1154 = vor.u32 %v1150, %v1153
        %v1155 = vsel %vm1026, %v1146, %v1154
        %v1157 = vshrl.u32 %v799, 16
        %v1159 = vrot.slane %v1157, 3
        %v1160 = vshll.u32 %v799, 16
        %v1162 = vrot.slane %v1160, 4
        %v1163 = vor.u32 %v1159, %v1162
        %v1165 = vshrl.u32 %v800, 16
        %v1167 = vrot.slane %v1165, 3
        %v1168 = vshll.u32 %v800, 16
        %v1170 = vrot.slane %v1168, 4
        %v1171 = vor.u32 %v1167, %v1170
        %v1172 = vsel %vm1026, %v1163, %v1171
        %v1174 = vshrl.u32 %v864, 16
        %v1176 = vrot.slane %v1174, 3
        %v1177 = vshll.u32 %v864, 16
        %v1179 = vrot.slane %v1177, 4
        %v1180 = vor.u32 %v1176, %v1179
        %v1181 = vsel %vm1026, %v1180, %v1180
        %v1183 = vshrl.u32 %v989, 16
        %v1185 = vrot.slane %v1183, 3
        %v1186 = vshll.u32 %v989, 16
        %v1188 = vrot.slane %v1186, 4
        %v1189 = vor.u32 %v1185, %v1188
        %v1191 = vshrl.u32 %v991, 16
        %v1193 = vrot.slane %v1191, 3
        %v1194 = vshll.u32 %v991, 16
        %v1196 = vrot.slane %v1194, 4
        %v1197 = vor.u32 %v1193, %v1196
        %v1198 = vsel %vm1026, %v1189, %v1197
        %v1200 = vshrl.u32 %v801, 16
        %v1202 = vrot.slane %v1200, 3
        %v1203 = vshll.u32 %v801, 16
        %v1205 = vrot.slane %v1203, 4
        %v1206 = vor.u32 %v1202, %v1205
        %v1208 = vshrl.u32 %v802, 16
        %v1210 = vrot.slane %v1208, 3
        %v1211 = vshll.u32 %v802, 16
        %v1213 = vrot.slane %v1211, 4
        %v1214 = vor.u32 %v1210, %v1213
        %v1215 = vsel %vm1026, %v1206, %v1214
        %v1217 = vshrl.u32 %v872, 16
        %v1219 = vrot.slane %v1217, 3
        %v1220 = vshll.u32 %v872, 16
        %v1222 = vrot.slane %v1220, 4
        %v1223 = vor.u32 %v1219, %v1222
        %v1224 = vsel %vm1026, %v1223, %v1223
        %v1226 = vshrl.u32 %v992, 16
        %v1228 = vrot.slane %v1226, 3
        %v1229 = vshll.u32 %v992, 16
        %v1231 = vrot.slane %v1229, 4
        %v1232 = vor.u32 %v1228, %v1231
        %v1234 = vshrl.u32 %v994, 16
        %v1236 = vrot.slane %v1234, 3
        %v1237 = vshll.u32 %v994, 16
        %v1239 = vrot.slane %v1237, 4
        %v1240 = vor.u32 %v1236, %v1239
        %v1241 = vsel %vm1026, %v1232, %v1240
        %v1243 = vshrl.u32 %v803, 16
        %v1245 = vrot.slane %v1243, 3
        %v1246 = vshll.u32 %v803, 16
        %v1248 = vrot.slane %v1246, 4
        %v1249 = vor.u32 %v1245, %v1248
        %v1251 = vshrl.u32 %v804, 16
        %v1253 = vrot.slane %v1251, 3
        %v1254 = vshll.u32 %v804, 16
        %v1256 = vrot.slane %v1254, 4
        %v1257 = vor.u32 %v1253, %v1256
        %v1258 = vsel %vm1026, %v1249, %v1257
        %v1260 = vshrl.u32 %v880, 16
        %v1262 = vrot.slane %v1260, 3
        %v1263 = vshll.u32 %v880, 16
        %v1265 = vrot.slane %v1263, 4
        %v1266 = vor.u32 %v1262, %v1265
        %v1267 = vsel %vm1026, %v1266, %v1266
        %v1269 = vshrl.u32 %v995, 16
        %v1271 = vrot.slane %v1269, 3
        %v1272 = vshll.u32 %v995, 16
        %v1274 = vrot.slane %v1272, 4
        %v1275 = vor.u32 %v1271, %v1274
        %v1277 = vshrl.u32 %v997, 16
        %v1279 = vrot.slane %v1277, 3
        %v1280 = vshll.u32 %v997, 16
        %v1282 = vrot.slane %v1280, 4
        %v1283 = vor.u32 %v1279, %v1282
        %v1284 = vsel %vm1026, %v1275, %v1283
        %v1286 = vshrl.u32 %v805, 16
        %v1288 = vrot.slane %v1286, 3
        %v1289 = vshll.u32 %v805, 16
        %v1291 = vrot.slane %v1289, 4
        %v1292 = vor.u32 %v1288, %v1291
        %v1294 = vshrl.u32 %v806, 16
        %v1296 = vrot.slane %v1294, 3
        %v1297 = vshll.u32 %v806, 16
        %v1299 = vrot.slane %v1297, 4
        %v1300 = vor.u32 %v1296, %v1299
        %v1301 = vsel %vm1026, %v1292, %v1300
        %v1303 = vshrl.u32 %v888, 16
        %v1305 = vrot.slane %v1303, 3
        %v1306 = vshll.u32 %v888, 16
        %v1308 = vrot.slane %v1306, 4
        %v1309 = vor.u32 %v1305, %v1308
        %v1310 = vsel %vm1026, %v1309, %v1309
        %v1312 = vshrl.u32 %v998, 16
        %v1314 = vrot.slane %v1312, 3
        %v1315 = vshll.u32 %v998, 16
        %v1317 = vrot.slane %v1315, 4
        %v1318 = vor.u32 %v1314, %v1317
        %v1320 = vshrl.u32 %v1000, 16
        %v1322 = vrot.slane %v1320, 3
        %v1323 = vshll.u32 %v1000, 16
        %v1325 = vrot.slane %v1323, 4
        %v1326 = vor.u32 %v1322, %v1325
        %v1327 = vsel %vm1026, %v1318, %v1326
        %v1329 = vshrl.u32 %v807, 16
        %v1331 = vrot.slane %v1329, 3
        %v1332 = vshll.u32 %v807, 16
        %v1334 = vrot.slane %v1332, 4
        %v1335 = vor.u32 %v1331, %v1334
        %v1337 = vshrl.u32 %v808, 16
        %v1339 = vrot.slane %v1337, 3
        %v1340 = vshll.u32 %v808, 16
        %v1342 = vrot.slane %v1340, 4
        %v1343 = vor.u32 %v1339, %v1342
        %v1344 = vsel %vm1026, %v1335, %v1343
        %v1346 = vshrl.u32 %v896, 16
        %v1348 = vrot.slane %v1346, 3
        %v1349 = vshll.u32 %v896, 16
        %v1351 = vrot.slane %v1349, 4
        %v1352 = vor.u32 %v1348, %v1351
        %v1353 = vsel %vm1026, %v1352, %v1352
        %v1355 = vshrl.u32 %v1001, 16
        %v1357 = vrot.slane %v1355, 3
        %v1358 = vshll.u32 %v1001, 16
        %v1360 = vrot.slane %v1358, 4
        %v1361 = vor.u32 %v1357, %v1360
        %v1363 = vshrl.u32 %v1003, 16
        %v1365 = vrot.slane %v1363, 3
        %v1366 = vshll.u32 %v1003, 16
        %v1368 = vrot.slane %v1366, 4
        %v1369 = vor.u32 %v1365, %v1368
        %v1370 = vsel %vm1026, %v1361, %v1369
        %v1372 = vshrl.u32 %v815, 16
        %v1374 = vrot.slane %v1372, 3
        %v1375 = vshll.u32 %v815, 16
        %v1377 = vrot.slane %v1375, 4
        %v1378 = vor.u32 %v1374, %v1377
        %v1380 = vshrl.u32 %v816, 16
        %v1382 = vrot.slane %v1380, 3
        %v1383 = vshll.u32 %v816, 16
        %v1385 = vrot.slane %v1383, 4
        %v1386 = vor.u32 %v1382, %v1385
        %v1387 = vsel %vm1026, %v1378, %v1386
        %v1389 = vshrl.u32 %v905, 16
        %v1391 = vrot.slane %v1389, 3
        %v1392 = vshll.u32 %v905, 16
        %v1394 = vrot.slane %v1392, 4
        %v1395 = vor.u32 %v1391, %v1394
        %v1396 = vsel %vm1026, %v1395, %v1395
        %v1398 = vshrl.u32 %v1012, 16
        %v1400 = vrot.slane %v1398, 3
        %v1401 = vshll.u32 %v1012, 16
        %v1403 = vrot.slane %v1401, 4
        %v1404 = vor.u32 %v1400, %v1403
        %v1406 = vshrl.u32 %v1014, 16
        %v1408 = vrot.slane %v1406, 3
        %v1409 = vshll.u32 %v1014, 16
        %v1411 = vrot.slane %v1409, 4
        %v1412 = vor.u32 %v1408, %v1411
        %v1413 = vsel %vm1026, %v1404, %v1412
        %v1415 = vshrl.u32 %v823, 16
        %v1417 = vrot.slane %v1415, 3
        %v1418 = vshll.u32 %v823, 16
        %v1420 = vrot.slane %v1418, 4
        %v1421 = vor.u32 %v1417, %v1420
        %v1423 = vshrl.u32 %v824, 16
        %v1425 = vrot.slane %v1423, 3
        %v1426 = vshll.u32 %v824, 16
        %v1428 = vrot.slane %v1426, 4
        %v1429 = vor.u32 %v1425, %v1428
        %v1430 = vsel %vm1026, %v1421, %v1429
        %v1432 = vshrl.u32 %v914, 16
        %v1434 = vrot.slane %v1432, 3
        %v1435 = vshll.u32 %v914, 16
        %v1437 = vrot.slane %v1435, 4
        %v1438 = vor.u32 %v1434, %v1437
        %v1439 = vsel %vm1026, %v1438, %v1438
        %v1441 = vshrl.u32 %v1023, 16
        %v1443 = vrot.slane %v1441, 3
        %v1444 = vshll.u32 %v1023, 16
        %v1446 = vrot.slane %v1444, 4
        %v1447 = vor.u32 %v1443, %v1446
        %v1449 = vshrl.u32 %v1025, 16
        %v1451 = vrot.slane %v1449, 3
        %v1452 = vshll.u32 %v1025, 16
        %v1454 = vrot.slane %v1452, 4
        %v1455 = vor.u32 %v1451, %v1454
        %v1456 = vsel %vm1026, %v1447, %v1455
        %v1487 = vld [vmem:[%s3] sm:$0xf]
        %v1488 = vld [vmem:[%s3 + $0x4] sm:$0xf]
        %v1489 = vld [vmem:[%s3 + $0x8] sm:$0xf]
        %v1490 = vld [vmem:[%s3 + $0xc] sm:$0xf]
        %v1491 = vld [vmem:[%s3 + $0x10] sm:$0xf]
        %v1492 = vld [vmem:[%s3 + $0x14] sm:$0xf]
        %v1493 = vld [vmem:[%s3 + $0x18] sm:$0xf]
        %v1494 = vld [vmem:[%s3 + $0x1c] sm:$0xf]
        %v1495 = vld [vmem:[%s3 + $0x20] sm:$0xf]
        %v1496 = vld [vmem:[%s3 + $0x24] sm:$0xf]
        %v1497 = vld [vmem:[%s3 + $0x28] sm:$0xf]
        %v1498 = vld [vmem:[%s3 + $0x2c] sm:$0xf]
        %v1499 = vld [vmem:[%s3 + $0x30] sm:$0xf]
        %v1500 = vld [vmem:[%s3 + $0x34] sm:$0xf]
        %v1501 = vld [vmem:[%s3 + $0x38] sm:$0xf]
        %v1502 = vld [vmem:[%s3 + $0x3c] sm:$0xf]
        %v1503 = vld [vmem:[%s3 + $0x40] sm:$0xf]
        %v1504 = vld [vmem:[%s3 + $0x44] sm:$0xf]
        %v1505 = vld [vmem:[%s3 + $0x48] sm:$0xf]
        %v1506 = vld [vmem:[%s3 + $0x4c] sm:$0xf]
        %v1507 = vld [vmem:[%s3 + $0x50] sm:$0xf]
        %v1508 = vld [vmem:[%s3 + $0x54] sm:$0xf]
        %v1509 = vld [vmem:[%s3 + $0x58] sm:$0xf]
        %v1510 = vld [vmem:[%s3 + $0x5c] sm:$0xf]
        %v1511 = vld [vmem:[%s3 + $0x60] sm:$0xf]
        %v1512 = vld [vmem:[%s3 + $0x64] sm:$0xf]
        %v1513 = vld [vmem:[%s3 + $0x68] sm:$0xf]
        %v1514 = vld [vmem:[%s3 + $0x6c] sm:$0xf]
        %v1515 = vld [vmem:[%s3 + $0x70] sm:$0xf]
        %v1516 = vld [vmem:[%s3 + $0x74] sm:$0xf]
        %v1517 = vld [vmem:[%s3 + $0x78] sm:$0xf]
        %v1518 = vld [vmem:[%s3 + $0x7c] sm:$0xf]
        %v1519 = vld [vmem:[%s3 + $0x80] sm:$0xf]
        %v1520 = vld [vmem:[%s3 + $0x84] sm:$0xf]
        %v1521 = vld [vmem:[%s3 + $0x88] sm:$0xf]
        %v1522 = vld [vmem:[%s3 + $0x8c] sm:$0xf]
        %v1523 = vld [vmem:[%s3 + $0x90] sm:$0xf]
        %v1524 = vld [vmem:[%s3 + $0x94] sm:$0xf]
        %v1525 = vld [vmem:[%s3 + $0x98] sm:$0xf]
        %v1526 = vld [vmem:[%s3 + $0x9c] sm:$0xf]
        %v1527 = vld [vmem:[%s3 + $0xa0] sm:$0xf]
        %v1528 = vld [vmem:[%s3 + $0xa4] sm:$0xf]
        %v1529 = vld [vmem:[%s3 + $0xa8] sm:$0xf]
        %v1530 = vld [vmem:[%s3 + $0xac] sm:$0xf]
        %v1531 = vld [vmem:[%s3 + $0xb0] sm:$0xf]
        %v1532 = vld [vmem:[%s3 + $0xb4] sm:$0xf]
        %v1533 = vld [vmem:[%s3 + $0xb8] sm:$0xf]
        %v1534 = vld [vmem:[%s3 + $0xbc] sm:$0xf]
        %v1535 = vld [vmem:[%s3 + $0xc0] sm:$0xf]
        %v1536 = vld [vmem:[%s3 + $0xc4] sm:$0xf]
        %v1537 = vld [vmem:[%s3 + $0xc8] sm:$0xf]
        %v1538 = vld [vmem:[%s3 + $0xcc] sm:$0xf]
        %v1539 = vld [vmem:[%s3 + $0xd0] sm:$0xf]
        %v1540 = vld [vmem:[%s3 + $0xd4] sm:$0xf]
        %v1541 = vld [vmem:[%s3 + $0xd8] sm:$0xf]
        %v1542 = vld [vmem:[%s3 + $0xdc] sm:$0xf]
        %v1543 = vld [vmem:[%s3 + $0xe0] sm:$0xf]
        %v1544 = vld [vmem:[%s3 + $0xe4] sm:$0xf]
        %v1545 = vld [vmem:[%s3 + $0xe8] sm:$0xf]
        %v1546 = vld [vmem:[%s3 + $0xec] sm:$0xf]
        %v1547 = vld [vmem:[%s3 + $0xf0] sm:$0xf]
        %v1548 = vld [vmem:[%s3 + $0xf4] sm:$0xf]
        %v1549 = vld [vmem:[%s3 + $0xf8] sm:$0xf]
        %v1550 = vld [vmem:[%s3 + $0xfc] sm:$0xf]
        %v1551 = vld [vmem:[%s3 + $0x100] sm:$0xf]
        %v1552 = vld [vmem:[%s3 + $0x104] sm:$0xf]
        %v1553 = vld [vmem:[%s3 + $0x108] sm:$0xf]
        %v1554 = vld [vmem:[%s3 + $0x10c] sm:$0xf]
        %v1555 = vld [vmem:[%s3 + $0x110] sm:$0xf]
        %v1556 = vld [vmem:[%s3 + $0x114] sm:$0xf]
        %v1557 = vld [vmem:[%s3 + $0x118] sm:$0xf]
        %v1558 = vld [vmem:[%s3 + $0x11c] sm:$0xf]
        %v1559 = vld [vmem:[%s3 + $0x120] sm:$0xf]
        %v1560 = vld [vmem:[%s3 + $0x124] sm:$0xf]
        %v1561 = vld [vmem:[%s3 + $0x128] sm:$0xf]
        %v1562 = vld [vmem:[%s3 + $0x12c] sm:$0xf]
        %v1563 = vld [vmem:[%s3 + $0x130] sm:$0xf]
        %v1564 = vld [vmem:[%s3 + $0x134] sm:$0xf]
        %v1565 = vld [vmem:[%s3 + $0x138] sm:$0xf]
        %v1566 = vld [vmem:[%s3 + $0x13c] sm:$0xf]
        %v1567 = vld [vmem:[%s3 + $0x140] sm:$0xf]
        %v1568 = vld [vmem:[%s3 + $0x144] sm:$0xf]
        %v1569 = vld [vmem:[%s3 + $0x148] sm:$0xf]
        %v1570 = vld [vmem:[%s3 + $0x14c] sm:$0xf]
        %v1571 = vld [vmem:[%s3 + $0x150] sm:$0xf]
        %v1572 = vld [vmem:[%s3 + $0x154] sm:$0xf]
        %v1573 = vld [vmem:[%s3 + $0x158] sm:$0xf]
        %v1574 = vld [vmem:[%s3 + $0x15c] sm:$0xf]
        %v1575 = vld [vmem:[%s3 + $0x160] sm:$0xf]
        %v1576 = vld [vmem:[%s3 + $0x164] sm:$0xf]
        %v1577 = vld [vmem:[%s3 + $0x168] sm:$0xf]
        %v1578 = vld [vmem:[%s3 + $0x16c] sm:$0xf]
        %v1579 = vld [vmem:[%s3 + $0x170] sm:$0xf]
        %v1580 = vld [vmem:[%s3 + $0x174] sm:$0xf]
        %v1581 = vld [vmem:[%s3 + $0x178] sm:$0xf]
        %v1582 = vld [vmem:[%s3 + $0x17c] sm:$0xf]
        %v1583 = vld [vmem:[%s3 + $0x180] sm:$0xf]
        %v1584 = vld [vmem:[%s3 + $0x184] sm:$0xf]
        %v1585 = vld [vmem:[%s3 + $0x188] sm:$0xf]
        %v1586 = vld [vmem:[%s3 + $0x18c] sm:$0xf]
        %v1587 = vld [vmem:[%s3 + $0x190] sm:$0xf]
        %v1588 = vld [vmem:[%s3 + $0x194] sm:$0xf]
        %v1589 = vld [vmem:[%s3 + $0x198] sm:$0xf]
        %v1590 = vld [vmem:[%s3 + $0x19c] sm:$0xf]
        %v1591 = vld [vmem:[%s3 + $0x1a0] sm:$0xf]
        %v1592 = vld [vmem:[%s3 + $0x1a4] sm:$0xf]
        %v1593 = vld [vmem:[%s3 + $0x1a8] sm:$0xf]
        %v1594 = vld [vmem:[%s3 + $0x1ac] sm:$0xf]
        %v1595 = vld [vmem:[%s3 + $0x1b0] sm:$0xf]
        %v1596 = vld [vmem:[%s3 + $0x1b4] sm:$0xf]
        %v1597 = vld [vmem:[%s3 + $0x1b8] sm:$0xf]
        %v1598 = vld [vmem:[%s3 + $0x1bc] sm:$0xf]
        %v1599 = vld [vmem:[%s3 + $0x1c0] sm:$0xf]
        %v1600 = vld [vmem:[%s3 + $0x1c4] sm:$0xf]
        %v1601 = vld [vmem:[%s3 + $0x1c8] sm:$0xf]
        %v1602 = vld [vmem:[%s3 + $0x1cc] sm:$0xf]
        %v1603 = vld [vmem:[%s3 + $0x1d0] sm:$0xf]
        %v1604 = vld [vmem:[%s3 + $0x1d4] sm:$0xf]
        %v1605 = vld [vmem:[%s3 + $0x1d8] sm:$0xf]
        %v1606 = vld [vmem:[%s3 + $0x1dc] sm:$0xf]
        %v1607 = vld [vmem:[%s3 + $0x1e0] sm:$0xf]
        %v1608 = vld [vmem:[%s3 + $0x1e4] sm:$0xf]
        %v1609 = vld [vmem:[%s3 + $0x1e8] sm:$0xf]
        %v1610 = vld [vmem:[%s3 + $0x1ec] sm:$0xf]
        %v1611 = vld [vmem:[%s3 + $0x1f0] sm:$0xf]
        %v1612 = vld [vmem:[%s3 + $0x1f4] sm:$0xf]
        %v1613 = vld [vmem:[%s3 + $0x1f8] sm:$0xf]
        %v1614 = vld [vmem:[%s3 + $0x1fc] sm:$0xf]
        %v1615 = vld [vmem:[%s3 + $0x200] sm:$0xf]
        %v1616 = vld [vmem:[%s3 + $0x204] sm:$0xf]
        %v1617 = vld [vmem:[%s3 + $0x208] sm:$0xf]
        %v1618 = vld [vmem:[%s3 + $0x20c] sm:$0xf]
        %v1619 = vld [vmem:[%s3 + $0x210] sm:$0xf]
        %v1620 = vld [vmem:[%s3 + $0x214] sm:$0xf]
        %v1621 = vld [vmem:[%s3 + $0x218] sm:$0xf]
        %v1622 = vld [vmem:[%s3 + $0x21c] sm:$0xf]
        %v1623 = vld [vmem:[%s3 + $0x220] sm:$0xf]
        %v1624 = vld [vmem:[%s3 + $0x224] sm:$0xf]
        %v1625 = vld [vmem:[%s3 + $0x228] sm:$0xf]
        %v1626 = vld [vmem:[%s3 + $0x22c] sm:$0xf]
        %v1627 = vld [vmem:[%s3 + $0x230] sm:$0xf]
        %v1628 = vld [vmem:[%s3 + $0x234] sm:$0xf]
        %v1629 = vld [vmem:[%s3 + $0x238] sm:$0xf]
        %v1630 = vld [vmem:[%s3 + $0x23c] sm:$0xf]
        %v1632 = vperm.slane %v390, 0
        %v1778 = vunpack.c.l.b16 %v1487
        %v1779 = vunpack.c.l.b16 %v1488
        %v1780 = vunpack.c.l.b16 %v1489
        %v1781 = vunpack.c.l.b16 %v1490
        %v1782 = vunpack.c.l.b16 %v1491
        %v1783 = vunpack.c.l.b16 %v1492
        %v1784 = vunpack.c.l.b16 %v1493
        %v1785 = vunpack.c.l.b16 %v1494
        %v1786 = vunpack.c.l.b16 %v1495
        %v1787 = vunpack.c.l.b16 %v1496
        %v1788 = vunpack.c.l.b16 %v1497
        %v1789 = vunpack.c.l.b16 %v1498
        %v1790 = vunpack.c.l.b16 %v1499
        %v1791 = vunpack.c.l.b16 %v1500
        %v1792 = vunpack.c.l.b16 %v1501
        %v1793 = vunpack.c.l.b16 %v1502
        %v1794 = vunpack.c.l.b16 %v1503
        %v1795 = vunpack.c.l.b16 %v1504
        %v1796 = vunpack.c.l.b16 %v1505
        %v1797 = vunpack.c.l.b16 %v1506
        %v1798 = vunpack.c.l.b16 %v1507
        %v1799 = vunpack.c.l.b16 %v1508
        %v1800 = vunpack.c.l.b16 %v1509
        %v1801 = vunpack.c.l.b16 %v1510
        %v1802 = vunpack.c.l.b16 %v1511
        %v1803 = vunpack.c.l.b16 %v1512
        %v1804 = vunpack.c.l.b16 %v1513
        %v1805 = vunpack.c.l.b16 %v1514
        %v1806 = vunpack.c.l.b16 %v1515
        %v1807 = vunpack.c.l.b16 %v1516
        %v1808 = vunpack.c.l.b16 %v1517
        %v1809 = vunpack.c.l.b16 %v1518
        %v1810 = vunpack.c.l.b16 %v1519
        %v1811 = vunpack.c.l.b16 %v1520
        %v1812 = vunpack.c.l.b16 %v1521
        %v1813 = vunpack.c.l.b16 %v1522
        %v1814 = vunpack.c.l.b16 %v1523
        %v1815 = vunpack.c.l.b16 %v1524
        %v1816 = vunpack.c.l.b16 %v1525
        %v1817 = vunpack.c.l.b16 %v1526
        %v1818 = vunpack.c.l.b16 %v1527
        %v1819 = vunpack.c.l.b16 %v1528
        %v1820 = vunpack.c.l.b16 %v1529
        %v1821 = vunpack.c.l.b16 %v1530
        %v1822 = vunpack.c.l.b16 %v1531
        %v1823 = vunpack.c.l.b16 %v1532
        %v1824 = vunpack.c.l.b16 %v1533
        %v1825 = vunpack.c.l.b16 %v1534
        %v1826 = vunpack.c.l.b16 %v1535
        %v1827 = vunpack.c.l.b16 %v1536
        %v1828 = vunpack.c.l.b16 %v1537
        %v1829 = vunpack.c.l.b16 %v1538
        %v1830 = vunpack.c.l.b16 %v1539
        %v1831 = vunpack.c.l.b16 %v1540
        %v1832 = vunpack.c.l.b16 %v1541
        %v1833 = vunpack.c.l.b16 %v1542
        %v1834 = vunpack.c.l.b16 %v1543
        %v1835 = vunpack.c.l.b16 %v1544
        %v1836 = vunpack.c.l.b16 %v1545
        %v1837 = vunpack.c.l.b16 %v1546
        %v1838 = vunpack.c.l.b16 %v1547
        %v1839 = vunpack.c.l.b16 %v1548
        %v1840 = vunpack.c.l.b16 %v1549
        %v1841 = vunpack.c.l.b16 %v1550
        %v1842 = vunpack.c.l.b16 %v1551
        %v1843 = vunpack.c.l.b16 %v1552
        %v1844 = vunpack.c.l.b16 %v1553
        %v1845 = vunpack.c.l.b16 %v1554
        %v1846 = vunpack.c.l.b16 %v1555
        %v1847 = vunpack.c.l.b16 %v1556
        %v1848 = vunpack.c.l.b16 %v1557
        %v1849 = vunpack.c.l.b16 %v1558
        %v1850 = vunpack.c.l.b16 %v1559
        %v1851 = vunpack.c.l.b16 %v1560
        %v1852 = vunpack.c.l.b16 %v1561
        %v1853 = vunpack.c.l.b16 %v1562
        %v1854 = vunpack.c.l.b16 %v1563
        %v1855 = vunpack.c.l.b16 %v1564
        %v1856 = vunpack.c.l.b16 %v1565
        %v1857 = vunpack.c.l.b16 %v1566
        %v1858 = vunpack.c.l.b16 %v1567
        %v1859 = vunpack.c.l.b16 %v1568
        %v1860 = vunpack.c.l.b16 %v1569
        %v1861 = vunpack.c.l.b16 %v1570
        %v1862 = vunpack.c.l.b16 %v1571
        %v1863 = vunpack.c.l.b16 %v1572
        %v1864 = vunpack.c.l.b16 %v1573
        %v1865 = vunpack.c.l.b16 %v1574
        %v1866 = vunpack.c.l.b16 %v1575
        %v1867 = vunpack.c.l.b16 %v1576
        %v1868 = vunpack.c.l.b16 %v1577
        %v1869 = vunpack.c.l.b16 %v1578
        %v1870 = vunpack.c.l.b16 %v1579
        %v1871 = vunpack.c.l.b16 %v1580
        %v1872 = vunpack.c.l.b16 %v1581
        %v1873 = vunpack.c.l.b16 %v1582
        %v1874 = vunpack.c.l.b16 %v1583
        %v1875 = vunpack.c.l.b16 %v1584
        %v1876 = vunpack.c.l.b16 %v1585
        %v1877 = vunpack.c.l.b16 %v1586
        %v1878 = vunpack.c.l.b16 %v1587
        %v1879 = vunpack.c.l.b16 %v1588
        %v1880 = vunpack.c.l.b16 %v1589
        %v1881 = vunpack.c.l.b16 %v1590
        %v1882 = vunpack.c.l.b16 %v1591
        %v1883 = vunpack.c.l.b16 %v1592
        %v1884 = vunpack.c.l.b16 %v1593
        %v1885 = vunpack.c.l.b16 %v1594
        %v1886 = vunpack.c.l.b16 %v1595
        %v1887 = vunpack.c.l.b16 %v1596
        %v1888 = vunpack.c.l.b16 %v1597
        %v1889 = vunpack.c.l.b16 %v1598
        %v1890 = vunpack.c.l.b16 %v1599
        %v1891 = vunpack.c.l.b16 %v1600
        %v1892 = vunpack.c.l.b16 %v1601
        %v1893 = vunpack.c.l.b16 %v1602
        %v1894 = vunpack.c.l.b16 %v1603
        %v1895 = vunpack.c.l.b16 %v1604
        %v1896 = vunpack.c.l.b16 %v1605
        %v1897 = vunpack.c.l.b16 %v1606
        %v1898 = vunpack.c.l.b16 %v1607
        %v1899 = vunpack.c.l.b16 %v1608
        %v1900 = vunpack.c.l.b16 %v1609
        %v1901 = vunpack.c.l.b16 %v1610
        %v1902 = vunpack.c.l.b16 %v1611
        %v1903 = vunpack.c.l.b16 %v1612
        %v1904 = vunpack.c.l.b16 %v1613
        %v1905 = vunpack.c.l.b16 %v1614
        %v1906 = vunpack.c.l.b16 %v1615
        %v1907 = vunpack.c.l.b16 %v1616
        %v1908 = vunpack.c.l.b16 %v1617
        %v1909 = vunpack.c.l.b16 %v1618
        %v1910 = vunpack.c.l.b16 %v1619
        %v1911 = vunpack.c.l.b16 %v1620
        %v1912 = vunpack.c.l.b16 %v1621
        %v1913 = vunpack.c.l.b16 %v1622
        %v1914 = vunpack.c.l.b16 %v1623
        %v1915 = vunpack.c.l.b16 %v1624
        %v1916 = vunpack.c.l.b16 %v1625
        %v1917 = vunpack.c.l.b16 %v1626
        %v1918 = vunpack.c.l.b16 %v1627
        %v1919 = vunpack.c.l.b16 %v1628
        %v1920 = vunpack.c.l.b16 %v1629
        %v1921 = vunpack.c.l.b16 %v1630
        %v1922 = vpack.c.b16 %v1779, %v1778
        %v1923 = vpack.c.b16 %v1781, %v1780
        %v1924 = vpack.c.b16 %v1783, %v1782
        %v1925 = vpack.c.b16 %v1785, %v1784
        %v1926 = vpack.c.b16 %v1787, %v1786
        %v1927 = vpack.c.b16 %v1789, %v1788
        %v1928 = vpack.c.b16 %v1791, %v1790
        %v1929 = vpack.c.b16 %v1793, %v1792
        %v1930 = vpack.c.b16 %v1795, %v1794
        %v1931 = vpack.c.b16 %v1797, %v1796
        %v1932 = vpack.c.b16 %v1799, %v1798
        %v1933 = vpack.c.b16 %v1801, %v1800
        %v1934 = vpack.c.b16 %v1803, %v1802
        %v1935 = vpack.c.b16 %v1805, %v1804
        %v1936 = vpack.c.b16 %v1807, %v1806
        %v1937 = vpack.c.b16 %v1809, %v1808
        %v1938 = vpack.c.b16 %v1811, %v1810
        %v1939 = vpack.c.b16 %v1813, %v1812
        %v1940 = vpack.c.b16 %v1815, %v1814
        %v1941 = vpack.c.b16 %v1817, %v1816
        %v1942 = vpack.c.b16 %v1819, %v1818
        %v1943 = vpack.c.b16 %v1821, %v1820
        %v1944 = vpack.c.b16 %v1823, %v1822
        %v1945 = vpack.c.b16 %v1825, %v1824
        %v1946 = vpack.c.b16 %v1827, %v1826
        %v1947 = vpack.c.b16 %v1829, %v1828
        %v1948 = vpack.c.b16 %v1831, %v1830
        %v1949 = vpack.c.b16 %v1833, %v1832
        %v1950 = vpack.c.b16 %v1835, %v1834
        %v1951 = vpack.c.b16 %v1837, %v1836
        %v1952 = vpack.c.b16 %v1839, %v1838
        %v1953 = vpack.c.b16 %v1841, %v1840
        %v1954 = vpack.c.b16 %v1843, %v1842
        %v1955 = vpack.c.b16 %v1845, %v1844
        %v1956 = vpack.c.b16 %v1847, %v1846
        %v1957 = vpack.c.b16 %v1849, %v1848
        %v1958 = vpack.c.b16 %v1851, %v1850
        %v1959 = vpack.c.b16 %v1853, %v1852
        %v1960 = vpack.c.b16 %v1855, %v1854
        %v1961 = vpack.c.b16 %v1857, %v1856
        %v1962 = vpack.c.b16 %v1859, %v1858
        %v1963 = vpack.c.b16 %v1861, %v1860
        %v1964 = vpack.c.b16 %v1863, %v1862
        %v1965 = vpack.c.b16 %v1865, %v1864
        %v1966 = vpack.c.b16 %v1867, %v1866
        %v1967 = vpack.c.b16 %v1869, %v1868
        %v1968 = vpack.c.b16 %v1871, %v1870
        %v1969 = vpack.c.b16 %v1873, %v1872
        %v1970 = vpack.c.b16 %v1875, %v1874
        %v1971 = vpack.c.b16 %v1877, %v1876
        %v1972 = vpack.c.b16 %v1879, %v1878
        %v1973 = vpack.c.b16 %v1881, %v1880
        %v1974 = vpack.c.b16 %v1883, %v1882
        %v1975 = vpack.c.b16 %v1885, %v1884
        %v1976 = vpack.c.b16 %v1887, %v1886
        %v1977 = vpack.c.b16 %v1889, %v1888
        %v1978 = vpack.c.b16 %v1891, %v1890
        %v1979 = vpack.c.b16 %v1893, %v1892
        %v1980 = vpack.c.b16 %v1895, %v1894
        %v1981 = vpack.c.b16 %v1897, %v1896
        %v1982 = vpack.c.b16 %v1899, %v1898
        %v1983 = vpack.c.b16 %v1901, %v1900
        %v1984 = vpack.c.b16 %v1903, %v1902
        %v1985 = vpack.c.b16 %v1905, %v1904
        %v1986 = vpack.c.b16 %v1907, %v1906
        %v1987 = vpack.c.b16 %v1909, %v1908
        %v1988 = vpack.c.b16 %v1911, %v1910
        %v1989 = vpack.c.b16 %v1913, %v1912
        %v1990 = vpack.c.b16 %v1915, %v1914
        %v1991 = vpack.c.b16 %v1917, %v1916
        %v1992 = vpack.c.b16 %v1919, %v1918
        %v1993 = vpack.c.b16 %v1921, %v1920
        %2066 = vmatpush.bf16.msra.mxu0 %v1929
        %2067 = vmatpush.bf16.msra.mxu0 %v1928
        %2068 = vmatpush.bf16.msra.mxu0 %v1927
        %2069 = vmatpush.bf16.msra.mxu0 %v1926
        %2070 = vmatpush.bf16.msra.mxu0 %v1925
        %2071 = vmatpush.bf16.msra.mxu0 %v1924
        %2072 = vmatpush.bf16.msra.mxu0 %v1923
        %2073 = vmatpush.bf16.msra.mxu0 %v1922
        %2074 = vmatmul.bf16.gmra.mxu0 %v1043
        %v2075 = vpop.f32.mrf.mxu0
        %v2076 = vadd.f32 %v1632, %v2075
        %v2077 = vpop.f32.mrf.mxu0
        %v2078 = vadd.f32 %v1632, %v2077
        %2079 = vmatmul.bf16.gmra.mxu0 %v1060
        %v2080 = vpop.f32.mrf.mxu0
        %v2081 = vadd.f32 %v1632, %v2080
        %v2082 = vpop.f32.mrf.mxu0
        %v2083 = vadd.f32 %v1632, %v2082
        %2084 = vmatmul.bf16.gmra.mxu0 %v1077
        %v2085 = vpop.f32.mrf.mxu0
        %v2086 = vadd.f32 %v1632, %v2085
        %v2087 = vpop.f32.mrf.mxu0
        %v2088 = vadd.f32 %v1632, %v2087
        %2089 = vmatmul.bf16.gmra.mxu0 %v1172
        %v2090 = vpop.f32.mrf.mxu0
        %v2091 = vadd.f32 %v1632, %v2090
        %v2092 = vpop.f32.mrf.mxu0
        %v2093 = vadd.f32 %v1632, %v2092
        %2094 = vmatmul.bf16.gmra.mxu0 %v1215
        %v2095 = vpop.f32.mrf.mxu0
        %v2096 = vadd.f32 %v1632, %v2095
        %v2097 = vpop.f32.mrf.mxu0
        %v2098 = vadd.f32 %v1632, %v2097
        %2099 = vmatmul.bf16.gmra.mxu0 %v1258
        %v2100 = vpop.f32.mrf.mxu0
        %v2101 = vadd.f32 %v1632, %v2100
        %v2102 = vpop.f32.mrf.mxu0
        %v2103 = vadd.f32 %v1632, %v2102
        %2104 = vmatmul.bf16.gmra.mxu0 %v1301
        %v2105 = vpop.f32.mrf.mxu0
        %v2106 = vadd.f32 %v1632, %v2105
        %v2107 = vpop.f32.mrf.mxu0
        %v2108 = vadd.f32 %v1632, %v2107
        %2109 = vmatmul.bf16.gmra.mxu0 %v1344
        %v2110 = vpop.f32.mrf.mxu0
        %v2111 = vadd.f32 %v1632, %v2110
        %v2112 = vpop.f32.mrf.mxu0
        %v2113 = vadd.f32 %v1632, %v2112
        %2114 = vdwg.mxu0
        %2115 = vmatpush.bf16.msra.mxu0 %v1937
        %2116 = vmatpush.bf16.msra.mxu0 %v1936
        %2117 = vmatpush.bf16.msra.mxu0 %v1935
        %2118 = vmatpush.bf16.msra.mxu0 %v1934
        %2119 = vmatpush.bf16.msra.mxu0 %v1933
        %2120 = vmatpush.bf16.msra.mxu0 %v1932
        %2121 = vmatpush.bf16.msra.mxu0 %v1931
        %2122 = vmatpush.bf16.msra.mxu0 %v1930
        %2123 = vmatmul.bf16.gmra.mxu0 %v1060
        %v2124 = vpop.f32.mrf.mxu0
        %v2125 = vadd.f32 %v2076, %v2124
        %v2126 = vpop.f32.mrf.mxu0
        %v2127 = vadd.f32 %v2078, %v2126
        %2128 = vmatmul.bf16.gmra.mxu0 %v1077
        %v2129 = vpop.f32.mrf.mxu0
        %v2130 = vadd.f32 %v2081, %v2129
        %v2131 = vpop.f32.mrf.mxu0
        %v2132 = vadd.f32 %v2083, %v2131
        %2133 = vmatmul.bf16.gmra.mxu0 %v1172
        %v2134 = vpop.f32.mrf.mxu0
        %v2135 = vadd.f32 %v2086, %v2134
        %v2136 = vpop.f32.mrf.mxu0
        %v2137 = vadd.f32 %v2088, %v2136
        %2138 = vmatmul.bf16.gmra.mxu0 %v1215
        %v2139 = vpop.f32.mrf.mxu0
        %v2140 = vadd.f32 %v2091, %v2139
        %v2141 = vpop.f32.mrf.mxu0
        %v2142 = vadd.f32 %v2093, %v2141
        %2143 = vmatmul.bf16.gmra.mxu0 %v1258
        %v2144 = vpop.f32.mrf.mxu0
        %v2145 = vadd.f32 %v2096, %v2144
        %v2146 = vpop.f32.mrf.mxu0
        %v2147 = vadd.f32 %v2098, %v2146
        %2148 = vmatmul.bf16.gmra.mxu0 %v1301
        %v2149 = vpop.f32.mrf.mxu0
        %v2150 = vadd.f32 %v2101, %v2149
        %v2151 = vpop.f32.mrf.mxu0
        %v2152 = vadd.f32 %v2103, %v2151
        %2153 = vmatmul.bf16.gmra.mxu0 %v1344
        %v2154 = vpop.f32.mrf.mxu0
        %v2155 = vadd.f32 %v2106, %v2154
        %v2156 = vpop.f32.mrf.mxu0
        %v2157 = vadd.f32 %v2108, %v2156
        %2158 = vmatmul.bf16.gmra.mxu0 %v1387
        %v2159 = vpop.f32.mrf.mxu0
        %v2160 = vadd.f32 %v2111, %v2159
        %v2161 = vpop.f32.mrf.mxu0
        %v2162 = vadd.f32 %v2113, %v2161
        %2163 = vdwg.mxu0
        %2164 = vmatpush.bf16.msra.mxu0 %v1945
        %2165 = vmatpush.bf16.msra.mxu0 %v1944
        %2166 = vmatpush.bf16.msra.mxu0 %v1943
        %2167 = vmatpush.bf16.msra.mxu0 %v1942
        %2168 = vmatpush.bf16.msra.mxu0 %v1941
        %2169 = vmatpush.bf16.msra.mxu0 %v1940
        %2170 = vmatpush.bf16.msra.mxu0 %v1939
        %2171 = vmatpush.bf16.msra.mxu0 %v1938
        %2172 = vmatmul.bf16.gmra.mxu0 %v1077
        %v2173 = vpop.f32.mrf.mxu0
        %v2174 = vadd.f32 %v2125, %v2173
        %v2175 = vpop.f32.mrf.mxu0
        %v2176 = vadd.f32 %v2127, %v2175
        %2177 = vmatmul.bf16.gmra.mxu0 %v1172
        %v2178 = vpop.f32.mrf.mxu0
        %v2179 = vadd.f32 %v2130, %v2178
        %v2180 = vpop.f32.mrf.mxu0
        %v2181 = vadd.f32 %v2132, %v2180
        %2182 = vmatmul.bf16.gmra.mxu0 %v1215
        %v2183 = vpop.f32.mrf.mxu0
        %v2184 = vadd.f32 %v2135, %v2183
        %v2185 = vpop.f32.mrf.mxu0
        %v2186 = vadd.f32 %v2137, %v2185
        %2187 = vmatmul.bf16.gmra.mxu0 %v1258
        %v2188 = vpop.f32.mrf.mxu0
        %v2189 = vadd.f32 %v2140, %v2188
        %v2190 = vpop.f32.mrf.mxu0
        %v2191 = vadd.f32 %v2142, %v2190
        %2192 = vmatmul.bf16.gmra.mxu0 %v1301
        %v2193 = vpop.f32.mrf.mxu0
        %v2194 = vadd.f32 %v2145, %v2193
        %v2195 = vpop.f32.mrf.mxu0
        %v2196 = vadd.f32 %v2147, %v2195
        %2197 = vmatmul.bf16.gmra.mxu0 %v1344
        %v2198 = vpop.f32.mrf.mxu0
        %v2199 = vadd.f32 %v2150, %v2198
        %v2200 = vpop.f32.mrf.mxu0
        %v2201 = vadd.f32 %v2152, %v2200
        %2202 = vmatmul.bf16.gmra.mxu0 %v1387
        %v2203 = vpop.f32.mrf.mxu0
        %v2204 = vadd.f32 %v2155, %v2203
        %v2205 = vpop.f32.mrf.mxu0
        %v2206 = vadd.f32 %v2157, %v2205
        %2207 = vmatmul.bf16.gmra.mxu0 %v1430
        %v2208 = vpop.f32.mrf.mxu0
        %v2209 = vadd.f32 %v2160, %v2208
        %v2210 = vpop.f32.mrf.mxu0
        %v2211 = vadd.f32 %v2162, %v2210
        %2212 = vdwg.mxu0
        %2213 = vmatpush.bf16.msra.mxu0 %v1953
        %2214 = vmatpush.bf16.msra.mxu0 %v1952
        %2215 = vmatpush.bf16.msra.mxu0 %v1951
        %2216 = vmatpush.bf16.msra.mxu0 %v1950
        %2217 = vmatpush.bf16.msra.mxu0 %v1949
        %2218 = vmatpush.bf16.msra.mxu0 %v1948
        %2219 = vmatpush.bf16.msra.mxu0 %v1947
        %2220 = vmatpush.bf16.msra.mxu0 %v1946
        %2221 = vmatmul.bf16.gmra.mxu0 %v1086
        %v2222 = vpop.f32.mrf.mxu0
        %v2223 = vadd.f32 %v2174, %v2222
        %v2224 = vpop.f32.mrf.mxu0
        %v2225 = vadd.f32 %v2176, %v2224
        %2226 = vmatmul.bf16.gmra.mxu0 %v1095
        %v2227 = vpop.f32.mrf.mxu0
        %v2228 = vadd.f32 %v2179, %v2227
        %v2229 = vpop.f32.mrf.mxu0
        %v2230 = vadd.f32 %v2181, %v2229
        %2231 = vmatmul.bf16.gmra.mxu0 %v1104
        %v2232 = vpop.f32.mrf.mxu0
        %v2233 = vadd.f32 %v2184, %v2232
        %v2234 = vpop.f32.mrf.mxu0
        %v2235 = vadd.f32 %v2186, %v2234
        %2236 = vmatmul.bf16.gmra.mxu0 %v1181
        %v2237 = vpop.f32.mrf.mxu0
        %v2238 = vadd.f32 %v2189, %v2237
        %v2239 = vpop.f32.mrf.mxu0
        %v2240 = vadd.f32 %v2191, %v2239
        %2241 = vmatmul.bf16.gmra.mxu0 %v1224
        %v2242 = vpop.f32.mrf.mxu0
        %v2243 = vadd.f32 %v2194, %v2242
        %v2244 = vpop.f32.mrf.mxu0
        %v2245 = vadd.f32 %v2196, %v2244
        %2246 = vmatmul.bf16.gmra.mxu0 %v1267
        %v2247 = vpop.f32.mrf.mxu0
        %v2248 = vadd.f32 %v2199, %v2247
        %v2249 = vpop.f32.mrf.mxu0
        %v2250 = vadd.f32 %v2201, %v2249
        %2251 = vmatmul.bf16.gmra.mxu0 %v1310
        %v2252 = vpop.f32.mrf.mxu0
        %v2253 = vadd.f32 %v2204, %v2252
        %v2254 = vpop.f32.mrf.mxu0
        %v2255 = vadd.f32 %v2206, %v2254
        %2256 = vmatmul.bf16.gmra.mxu0 %v1353
        %v2257 = vpop.f32.mrf.mxu0
        %v2258 = vadd.f32 %v2209, %v2257
        %v2259 = vpop.f32.mrf.mxu0
        %v2260 = vadd.f32 %v2211, %v2259
        %2261 = vdwg.mxu0
        %2262 = vmatpush.bf16.msra.mxu0 %v1961
        %2263 = vmatpush.bf16.msra.mxu0 %v1960
        %2264 = vmatpush.bf16.msra.mxu0 %v1959
        %2265 = vmatpush.bf16.msra.mxu0 %v1958
        %2266 = vmatpush.bf16.msra.mxu0 %v1957
        %2267 = vmatpush.bf16.msra.mxu0 %v1956
        %2268 = vmatpush.bf16.msra.mxu0 %v1955
        %2269 = vmatpush.bf16.msra.mxu0 %v1954
        %2270 = vmatmul.bf16.gmra.mxu0 %v1095
        %v2271 = vpop.f32.mrf.mxu0
        %v2272 = vadd.f32 %v2223, %v2271
        %v2273 = vpop.f32.mrf.mxu0
        %v2274 = vadd.f32 %v2225, %v2273
        %2275 = vmatmul.bf16.gmra.mxu0 %v1104
        %v2276 = vpop.f32.mrf.mxu0
        %v2277 = vadd.f32 %v2228, %v2276
        %v2278 = vpop.f32.mrf.mxu0
        %v2279 = vadd.f32 %v2230, %v2278
        %2280 = vmatmul.bf16.gmra.mxu0 %v1181
        %v2281 = vpop.f32.mrf.mxu0
        %v2282 = vadd.f32 %v2233, %v2281
        %v2283 = vpop.f32.mrf.mxu0
        %v2284 = vadd.f32 %v2235, %v2283
        %2285 = vmatmul.bf16.gmra.mxu0 %v1224
        %v2286 = vpop.f32.mrf.mxu0
        %v2287 = vadd.f32 %v2238, %v2286
        %v2288 = vpop.f32.mrf.mxu0
        %v2289 = vadd.f32 %v2240, %v2288
        %2290 = vmatmul.bf16.gmra.mxu0 %v1267
        %v2291 = vpop.f32.mrf.mxu0
        %v2292 = vadd.f32 %v2243, %v2291
        %v2293 = vpop.f32.mrf.mxu0
        %v2294 = vadd.f32 %v2245, %v2293
        %2295 = vmatmul.bf16.gmra.mxu0 %v1310
        %v2296 = vpop.f32.mrf.mxu0
        %v2297 = vadd.f32 %v2248, %v2296
        %v2298 = vpop.f32.mrf.mxu0
        %v2299 = vadd.f32 %v2250, %v2298
        %2300 = vmatmul.bf16.gmra.mxu0 %v1353
        %v2301 = vpop.f32.mrf.mxu0
        %v2302 = vadd.f32 %v2253, %v2301
        %v2303 = vpop.f32.mrf.mxu0
        %v2304 = vadd.f32 %v2255, %v2303
        %2305 = vmatmul.bf16.gmra.mxu0 %v1396
        %v2306 = vpop.f32.mrf.mxu0
        %v2307 = vadd.f32 %v2258, %v2306
        %v2308 = vpop.f32.mrf.mxu0
        %v2309 = vadd.f32 %v2260, %v2308
        %2310 = vdwg.mxu0
        %2311 = vmatpush.bf16.msra.mxu0 %v1969
        %2312 = vmatpush.bf16.msra.mxu0 %v1968
        %2313 = vmatpush.bf16.msra.mxu0 %v1967
        %2314 = vmatpush.bf16.msra.mxu0 %v1966
        %2315 = vmatpush.bf16.msra.mxu0 %v1965
        %2316 = vmatpush.bf16.msra.mxu0 %v1964
        %2317 = vmatpush.bf16.msra.mxu0 %v1963
        %2318 = vmatpush.bf16.msra.mxu0 %v1962
        %2319 = vmatmul.bf16.gmra.mxu0 %v1104
        %v2320 = vpop.f32.mrf.mxu0
        %v2321 = vadd.f32 %v2272, %v2320
        %v2322 = vpop.f32.mrf.mxu0
        %v2323 = vadd.f32 %v2274, %v2322
        %2324 = vmatmul.bf16.gmra.mxu0 %v1181
        %v2325 = vpop.f32.mrf.mxu0
        %v2326 = vadd.f32 %v2277, %v2325
        %v2327 = vpop.f32.mrf.mxu0
        %v2328 = vadd.f32 %v2279, %v2327
        %2329 = vmatmul.bf16.gmra.mxu0 %v1224
        %v2330 = vpop.f32.mrf.mxu0
        %v2331 = vadd.f32 %v2282, %v2330
        %v2332 = vpop.f32.mrf.mxu0
        %v2333 = vadd.f32 %v2284, %v2332
        %2334 = vmatmul.bf16.gmra.mxu0 %v1267
        %v2335 = vpop.f32.mrf.mxu0
        %v2336 = vadd.f32 %v2287, %v2335
        %v2337 = vpop.f32.mrf.mxu0
        %v2338 = vadd.f32 %v2289, %v2337
        %2339 = vmatmul.bf16.gmra.mxu0 %v1310
        %v2340 = vpop.f32.mrf.mxu0
        %v2341 = vadd.f32 %v2292, %v2340
        %v2342 = vpop.f32.mrf.mxu0
        %v2343 = vadd.f32 %v2294, %v2342
        %2344 = vmatmul.bf16.gmra.mxu0 %v1353
        %v2345 = vpop.f32.mrf.mxu0
        %v2346 = vadd.f32 %v2297, %v2345
        %v2347 = vpop.f32.mrf.mxu0
        %v2348 = vadd.f32 %v2299, %v2347
        %2349 = vmatmul.bf16.gmra.mxu0 %v1396
        %v2350 = vpop.f32.mrf.mxu0
        %v2351 = vadd.f32 %v2302, %v2350
        %v2352 = vpop.f32.mrf.mxu0
        %v2353 = vadd.f32 %v2304, %v2352
        %2354 = vmatmul.bf16.gmra.mxu0 %v1439
        %v2355 = vpop.f32.mrf.mxu0
        %v2356 = vadd.f32 %v2307, %v2355
        %v2357 = vpop.f32.mrf.mxu0
        %v2358 = vadd.f32 %v2309, %v2357
        %2359 = vdwg.mxu0
        %2360 = vmatpush.bf16.msra.mxu0 %v1977
        %2361 = vmatpush.bf16.msra.mxu0 %v1976
        %2362 = vmatpush.bf16.msra.mxu0 %v1975
        %2363 = vmatpush.bf16.msra.mxu0 %v1974
        %2364 = vmatpush.bf16.msra.mxu0 %v1973
        %2365 = vmatpush.bf16.msra.mxu0 %v1972
        %2366 = vmatpush.bf16.msra.mxu0 %v1971
        %2367 = vmatpush.bf16.msra.mxu0 %v1970
        %2368 = vmatmul.bf16.gmra.mxu0 %v1121
        %v2369 = vpop.f32.mrf.mxu0
        %v2370 = vadd.f32 %v2321, %v2369
        %v2371 = vpop.f32.mrf.mxu0
        %v2372 = vadd.f32 %v2323, %v2371
        %2373 = vmatmul.bf16.gmra.mxu0 %v1138
        %v2374 = vpop.f32.mrf.mxu0
        %v2375 = vadd.f32 %v2326, %v2374
        %v2376 = vpop.f32.mrf.mxu0
        %v2377 = vadd.f32 %v2328, %v2376
        %2378 = vmatmul.bf16.gmra.mxu0 %v1155
        %v2379 = vpop.f32.mrf.mxu0
        %v2380 = vadd.f32 %v2331, %v2379
        %v2381 = vpop.f32.mrf.mxu0
        %v2382 = vadd.f32 %v2333, %v2381
        %2383 = vmatmul.bf16.gmra.mxu0 %v1198
        %v2384 = vpop.f32.mrf.mxu0
        %v2385 = vadd.f32 %v2336, %v2384
        %v2386 = vpop.f32.mrf.mxu0
        %v2387 = vadd.f32 %v2338, %v2386
        %2388 = vmatmul.bf16.gmra.mxu0 %v1241
        %v2389 = vpop.f32.mrf.mxu0
        %v2390 = vadd.f32 %v2341, %v2389
        %v2391 = vpop.f32.mrf.mxu0
        %v2392 = vadd.f32 %v2343, %v2391
        %2393 = vmatmul.bf16.gmra.mxu0 %v1284
        %v2394 = vpop.f32.mrf.mxu0
        %v2395 = vadd.f32 %v2346, %v2394
        %v2396 = vpop.f32.mrf.mxu0
        %v2397 = vadd.f32 %v2348, %v2396
        %2398 = vmatmul.bf16.gmra.mxu0 %v1327
        %v2399 = vpop.f32.mrf.mxu0
        %v2400 = vadd.f32 %v2351, %v2399
        %v2401 = vpop.f32.mrf.mxu0
        %v2402 = vadd.f32 %v2353, %v2401
        %2403 = vmatmul.bf16.gmra.mxu0 %v1370
        %v2404 = vpop.f32.mrf.mxu0
        %v2405 = vadd.f32 %v2356, %v2404
        %v2406 = vpop.f32.mrf.mxu0
        %v2407 = vadd.f32 %v2358, %v2406
        %2408 = vdwg.mxu0
        %2409 = vmatpush.bf16.msra.mxu0 %v1985
        %2410 = vmatpush.bf16.msra.mxu0 %v1984
        %2411 = vmatpush.bf16.msra.mxu0 %v1983
        %2412 = vmatpush.bf16.msra.mxu0 %v1982
        %2413 = vmatpush.bf16.msra.mxu0 %v1981
        %2414 = vmatpush.bf16.msra.mxu0 %v1980
        %2415 = vmatpush.bf16.msra.mxu0 %v1979
        %2416 = vmatpush.bf16.msra.mxu0 %v1978
        %2417 = vmatmul.bf16.gmra.mxu0 %v1138
        %v2418 = vpop.f32.mrf.mxu0
        %v2419 = vadd.f32 %v2370, %v2418
        %v2420 = vpop.f32.mrf.mxu0
        %v2421 = vadd.f32 %v2372, %v2420
        %2422 = vmatmul.bf16.gmra.mxu0 %v1155
        %v2423 = vpop.f32.mrf.mxu0
        %v2424 = vadd.f32 %v2375, %v2423
        %v2425 = vpop.f32.mrf.mxu0
        %v2426 = vadd.f32 %v2377, %v2425
        %2427 = vmatmul.bf16.gmra.mxu0 %v1198
        %v2428 = vpop.f32.mrf.mxu0
        %v2429 = vadd.f32 %v2380, %v2428
        %v2430 = vpop.f32.mrf.mxu0
        %v2431 = vadd.f32 %v2382, %v2430
        %2432 = vmatmul.bf16.gmra.mxu0 %v1241
        %v2433 = vpop.f32.mrf.mxu0
        %v2434 = vadd.f32 %v2385, %v2433
        %v2435 = vpop.f32.mrf.mxu0
        %v2436 = vadd.f32 %v2387, %v2435
        %2437 = vmatmul.bf16.gmra.mxu0 %v1284
        %v2438 = vpop.f32.mrf.mxu0
        %v2439 = vadd.f32 %v2390, %v2438
        %v2440 = vpop.f32.mrf.mxu0
        %v2441 = vadd.f32 %v2392, %v2440
        %2442 = vmatmul.bf16.gmra.mxu0 %v1327
        %v2443 = vpop.f32.mrf.mxu0
        %v2444 = vadd.f32 %v2395, %v2443
        %v2445 = vpop.f32.mrf.mxu0
        %v2446 = vadd.f32 %v2397, %v2445
        %2447 = vmatmul.bf16.gmra.mxu0 %v1370
        %v2448 = vpop.f32.mrf.mxu0
        %v2449 = vadd.f32 %v2400, %v2448
        %v2450 = vpop.f32.mrf.mxu0
        %v2451 = vadd.f32 %v2402, %v2450
        %2452 = vmatmul.bf16.gmra.mxu0 %v1413
        %v2453 = vpop.f32.mrf.mxu0
        %v2454 = vadd.f32 %v2405, %v2453
        %v2455 = vpop.f32.mrf.mxu0
        %v2456 = vadd.f32 %v2407, %v2455
        %2457 = vdwg.mxu0
        %2458 = vmatpush.bf16.msra.mxu0 %v1993
        %2459 = vmatpush.bf16.msra.mxu0 %v1992
        %2460 = vmatpush.bf16.msra.mxu0 %v1991
        %2461 = vmatpush.bf16.msra.mxu0 %v1990
        %2462 = vmatpush.bf16.msra.mxu0 %v1989
        %2463 = vmatpush.bf16.msra.mxu0 %v1988
        %2464 = vmatpush.bf16.msra.mxu0 %v1987
        %2465 = vmatpush.bf16.msra.mxu0 %v1986
        %2466 = vmatmul.bf16.gmra.mxu0 %v1155
        %v2467 = vpop.f32.mrf.mxu0
        %v2468 = vadd.f32 %v2419, %v2467
        %v2469 = vpop.f32.mrf.mxu0
        %v2470 = vadd.f32 %v2421, %v2469
        %2471 = vmatmul.bf16.gmra.mxu0 %v1198
        %v2472 = vpop.f32.mrf.mxu0
        %v2473 = vadd.f32 %v2424, %v2472
        %v2474 = vpop.f32.mrf.mxu0
        %v2475 = vadd.f32 %v2426, %v2474
        %2476 = vmatmul.bf16.gmra.mxu0 %v1241
        %v2477 = vpop.f32.mrf.mxu0
        %v2478 = vadd.f32 %v2429, %v2477
        %v2479 = vpop.f32.mrf.mxu0
        %v2480 = vadd.f32 %v2431, %v2479
        %2481 = vmatmul.bf16.gmra.mxu0 %v1284
        %v2482 = vpop.f32.mrf.mxu0
        %v2483 = vadd.f32 %v2434, %v2482
        %v2484 = vpop.f32.mrf.mxu0
        %v2485 = vadd.f32 %v2436, %v2484
        %2486 = vmatmul.bf16.gmra.mxu0 %v1327
        %v2487 = vpop.f32.mrf.mxu0
        %v2488 = vadd.f32 %v2439, %v2487
        %v2489 = vpop.f32.mrf.mxu0
        %v2490 = vadd.f32 %v2441, %v2489
        %2491 = vmatmul.bf16.gmra.mxu0 %v1370
        %v2492 = vpop.f32.mrf.mxu0
        %v2493 = vadd.f32 %v2444, %v2492
        %v2494 = vpop.f32.mrf.mxu0
        %v2495 = vadd.f32 %v2446, %v2494
        %2496 = vmatmul.bf16.gmra.mxu0 %v1413
        %v2497 = vpop.f32.mrf.mxu0
        %v2498 = vadd.f32 %v2449, %v2497
        %v2499 = vpop.f32.mrf.mxu0
        %v2500 = vadd.f32 %v2451, %v2499
        %2501 = vmatmul.bf16.gmra.mxu0 %v1456
        %v2502 = vpop.f32.mrf.mxu0
        %v2503 = vadd.f32 %v2454, %v2502
        %v2504 = vpop.f32.mrf.mxu0
        %v2505 = vadd.f32 %v2456, %v2504
        %2506 = vdwg.mxu0
        %v2507 = vmax.f32 %v2468, 0.0
        %v2508 = vmax.f32 %v2470, 0.0
        %v2509 = vmax.f32 %v2473, 0.0
        %v2510 = vmax.f32 %v2475, 0.0
        %v2511 = vmax.f32 %v2478, 0.0
        %v2512 = vmax.f32 %v2480, 0.0
        %v2513 = vmax.f32 %v2483, 0.0
        %v2514 = vmax.f32 %v2485, 0.0
        %v2515 = vmax.f32 %v2488, 0.0
        %v2516 = vmax.f32 %v2490, 0.0
        %v2517 = vmax.f32 %v2493, 0.0
        %v2518 = vmax.f32 %v2495, 0.0
        %v2519 = vmax.f32 %v2498, 0.0
        %v2520 = vmax.f32 %v2500, 0.0
        %v2521 = vmax.f32 %v2503, 0.0
        %v2522 = vmax.f32 %v2505, 0.0
        %v2523 = vpack.c.bf16 %v2508, %v2507
        %v2524 = vpack.c.bf16 %v2510, %v2509
        %v2525 = vpack.c.bf16 %v2512, %v2511
        %v2526 = vpack.c.bf16 %v2514, %v2513
        %v2527 = vpack.c.bf16 %v2516, %v2515
        %v2528 = vpack.c.bf16 %v2518, %v2517
        %v2529 = vpack.c.bf16 %v2520, %v2519
        %v2530 = vpack.c.bf16 %v2522, %v2521
        %v2531 = vld [vmem:[%s4] sm:$0xf]
        %v2532 = vld [vmem:[%s4 + $0x4] sm:$0xf]
        %v2533 = vld [vmem:[%s4 + $0x8] sm:$0xf]
        %v2534 = vld [vmem:[%s4 + $0xc] sm:$0xf]
        %v2535 = vld [vmem:[%s4 + $0x10] sm:$0xf]
        %v2536 = vld [vmem:[%s4 + $0x14] sm:$0xf]
        %v2537 = vld [vmem:[%s4 + $0x18] sm:$0xf]
        %v2538 = vld [vmem:[%s4 + $0x1c] sm:$0xf]
        %v2539 = vld [vmem:[%s4 + $0x20] sm:$0xf]
        %v2540 = vld [vmem:[%s4 + $0x24] sm:$0xf]
        %v2541 = vld [vmem:[%s4 + $0x28] sm:$0xf]
        %v2542 = vld [vmem:[%s4 + $0x2c] sm:$0xf]
        %v2543 = vld [vmem:[%s4 + $0x30] sm:$0xf]
        %v2544 = vld [vmem:[%s4 + $0x34] sm:$0xf]
        %v2545 = vld [vmem:[%s4 + $0x38] sm:$0xf]
        %v2546 = vld [vmem:[%s4 + $0x3c] sm:$0xf]
        %v2548 = vperm.slane %v391, 0
        %v2566 = vunpack.c.l.b16 %v2531
        %v2567 = vunpack.c.l.b16 %v2532
        %v2568 = vunpack.c.l.b16 %v2533
        %v2569 = vunpack.c.l.b16 %v2534
        %v2570 = vunpack.c.l.b16 %v2535
        %v2571 = vunpack.c.l.b16 %v2536
        %v2572 = vunpack.c.l.b16 %v2537
        %v2573 = vunpack.c.l.b16 %v2538
        %v2574 = vunpack.c.l.b16 %v2539
        %v2575 = vunpack.c.l.b16 %v2540
        %v2576 = vunpack.c.l.b16 %v2541
        %v2577 = vunpack.c.l.b16 %v2542
        %v2578 = vunpack.c.l.b16 %v2543
        %v2579 = vunpack.c.l.b16 %v2544
        %v2580 = vunpack.c.l.b16 %v2545
        %v2581 = vunpack.c.l.b16 %v2546
        %v2582 = vpack.c.b16 %v2567, %v2566
        %v2583 = vpack.c.b16 %v2569, %v2568
        %v2584 = vpack.c.b16 %v2571, %v2570
        %v2585 = vpack.c.b16 %v2573, %v2572
        %v2586 = vpack.c.b16 %v2575, %v2574
        %v2587 = vpack.c.b16 %v2577, %v2576
        %v2588 = vpack.c.b16 %v2579, %v2578
        %v2589 = vpack.c.b16 %v2581, %v2580
        %2598 = vmatpush.bf16.msra.mxu0 %v2589
        %2599 = vmatpush.bf16.msra.mxu0 %v2588
        %2600 = vmatpush.bf16.msra.mxu0 %v2587
        %2601 = vmatpush.bf16.msra.mxu0 %v2586
        %2602 = vmatpush.bf16.msra.mxu0 %v2585
        %2603 = vmatpush.bf16.msra.mxu0 %v2584
        %2604 = vmatpush.bf16.msra.mxu0 %v2583
        %2605 = vmatpush.bf16.msra.mxu0 %v2582
        %2606 = vmatmul.bf16.gmra.mxu0 %v2523
        %v2607 = vpop.f32.mrf.mxu0
        %v2608 = vadd.f32 %v2548, %v2607
        %v2609 = vpop.f32.mrf.mxu0
        %v2610 = vadd.f32 %v2548, %v2609
        %2611 = vmatmul.bf16.gmra.mxu0 %v2524
        %v2612 = vpop.f32.mrf.mxu0
        %v2613 = vadd.f32 %v2548, %v2612
        %v2614 = vpop.f32.mrf.mxu0
        %v2615 = vadd.f32 %v2548, %v2614
        %2616 = vmatmul.bf16.gmra.mxu0 %v2525
        %v2617 = vpop.f32.mrf.mxu0
        %v2618 = vadd.f32 %v2548, %v2617
        %v2619 = vpop.f32.mrf.mxu0
        %v2620 = vadd.f32 %v2548, %v2619
        %2621 = vmatmul.bf16.gmra.mxu0 %v2526
        %v2622 = vpop.f32.mrf.mxu0
        %v2623 = vadd.f32 %v2548, %v2622
        %v2624 = vpop.f32.mrf.mxu0
        %v2625 = vadd.f32 %v2548, %v2624
        %2626 = vmatmul.bf16.gmra.mxu0 %v2527
        %v2627 = vpop.f32.mrf.mxu0
        %v2628 = vadd.f32 %v2548, %v2627
        %v2629 = vpop.f32.mrf.mxu0
        %v2630 = vadd.f32 %v2548, %v2629
        %2631 = vmatmul.bf16.gmra.mxu0 %v2528
        %v2632 = vpop.f32.mrf.mxu0
        %v2633 = vadd.f32 %v2548, %v2632
        %v2634 = vpop.f32.mrf.mxu0
        %v2635 = vadd.f32 %v2548, %v2634
        %2636 = vmatmul.bf16.gmra.mxu0 %v2529
        %v2637 = vpop.f32.mrf.mxu0
        %v2638 = vadd.f32 %v2548, %v2637
        %v2639 = vpop.f32.mrf.mxu0
        %v2640 = vadd.f32 %v2548, %v2639
        %2641 = vmatmul.bf16.gmra.mxu0 %v2530
        %v2642 = vpop.f32.mrf.mxu0
        %v2643 = vadd.f32 %v2548, %v2642
        %v2644 = vpop.f32.mrf.mxu0
        %v2645 = vadd.f32 %v2548, %v2644
        %2646 = vdwg.mxu0
        %v2647 = vunpack.c.l.bf16 %v392
        %v2648 = vunpack.c.l.bf16 %v393
        %v2649 = vunpack.c.l.bf16 %v394
        %v2650 = vunpack.c.l.bf16 %v395
        %v2651 = vunpack.c.l.bf16 %v396
        %v2652 = vunpack.c.l.bf16 %v397
        %v2653 = vunpack.c.l.bf16 %v398
        %v2654 = vunpack.c.l.bf16 %v399
        %v2655 = vunpack.c.l.bf16 %v400
        %v2656 = vunpack.c.l.bf16 %v401
        %v2657 = vunpack.c.l.bf16 %v402
        %v2658 = vunpack.c.l.bf16 %v403
        %v2659 = vunpack.c.l.bf16 %v404
        %v2660 = vunpack.c.l.bf16 %v405
        %v2661 = vunpack.c.l.bf16 %v406
        %v2662 = vunpack.c.l.bf16 %v407
        %v2663 = vadd.f32 %v2608, %v2647
        %v2664 = vadd.f32 %v2610, %v2648
        %v2665 = vadd.f32 %v2613, %v2649
        %v2666 = vadd.f32 %v2615, %v2650
        %v2667 = vadd.f32 %v2618, %v2651
        %v2668 = vadd.f32 %v2620, %v2652
        %v2669 = vadd.f32 %v2623, %v2653
        %v2670 = vadd.f32 %v2625, %v2654
        %v2671 = vadd.f32 %v2628, %v2655
        %v2672 = vadd.f32 %v2630, %v2656
        %v2673 = vadd.f32 %v2633, %v2657
        %v2674 = vadd.f32 %v2635, %v2658
        %v2675 = vadd.f32 %v2638, %v2659
        %v2676 = vadd.f32 %v2640, %v2660
        %v2677 = vadd.f32 %v2643, %v2661
        %v2678 = vadd.f32 %v2645, %v2662
        %v2679 = vmax.f32 %v2663, 0.0
        %v2680 = vmax.f32 %v2664, 0.0
        %v2681 = vmax.f32 %v2665, 0.0
        %v2682 = vmax.f32 %v2666, 0.0
        %v2683 = vmax.f32 %v2667, 0.0
        %v2684 = vmax.f32 %v2668, 0.0
        %v2685 = vmax.f32 %v2669, 0.0
        %v2686 = vmax.f32 %v2670, 0.0
        %v2687 = vmax.f32 %v2671, 0.0
        %v2688 = vmax.f32 %v2672, 0.0
        %v2689 = vmax.f32 %v2673, 0.0
        %v2690 = vmax.f32 %v2674, 0.0
        %v2691 = vmax.f32 %v2675, 0.0
        %v2692 = vmax.f32 %v2676, 0.0
        %v2693 = vmax.f32 %v2677, 0.0
        %v2694 = vmax.f32 %v2678, 0.0
        %v2695 = vpack.c.bf16 %v2679, %v2679
        %v2696 = vpack.c.bf16 %v2680, %v2680
        %v2697 = vpack.c.bf16 %v2681, %v2681
        %v2698 = vpack.c.bf16 %v2682, %v2682
        %v2699 = vpack.c.bf16 %v2683, %v2683
        %v2700 = vpack.c.bf16 %v2684, %v2684
        %v2701 = vpack.c.bf16 %v2685, %v2685
        %v2702 = vpack.c.bf16 %v2686, %v2686
        %v2703 = vpack.c.bf16 %v2687, %v2687
        %v2704 = vpack.c.bf16 %v2688, %v2688
        %v2705 = vpack.c.bf16 %v2689, %v2689
        %v2706 = vpack.c.bf16 %v2690, %v2690
        %v2707 = vpack.c.bf16 %v2691, %v2691
        %v2708 = vpack.c.bf16 %v2692, %v2692
        %v2709 = vpack.c.bf16 %v2693, %v2693
        %v2710 = vpack.c.bf16 %v2694, %v2694
        %2711 = vst [vmem:[%s350] sm:$0xf] %v2695
        %2712 = vst [vmem:[%s350 + $0x4] sm:$0xf] %v2696
        %2713 = vst [vmem:[%s350 + $0x8] sm:$0xf] %v2697
        %2714 = vst [vmem:[%s350 + $0xc] sm:$0xf] %v2698
        %2715 = vst [vmem:[%s350 + $0x10] sm:$0xf] %v2699
        %2716 = vst [vmem:[%s350 + $0x14] sm:$0xf] %v2700
        %2717 = vst [vmem:[%s350 + $0x18] sm:$0xf] %v2701
        %2718 = vst [vmem:[%s350 + $0x1c] sm:$0xf] %v2702
        %2719 = vst [vmem:[%s350 + $0x20] sm:$0xf] %v2703
        %2720 = vst [vmem:[%s350 + $0x24] sm:$0xf] %v2704
        %2721 = vst [vmem:[%s350 + $0x28] sm:$0xf] %v2705
        %2722 = vst [vmem:[%s350 + $0x2c] sm:$0xf] %v2706
        %2723 = vst [vmem:[%s350 + $0x30] sm:$0xf] %v2707
        %2724 = vst [vmem:[%s350 + $0x34] sm:$0xf] %v2708
        %2725 = vst [vmem:[%s350 + $0x38] sm:$0xf] %v2709
        %2726 = vst [vmem:[%s350 + $0x3c] sm:$0xf] %v2710
        %s2727 = sand.u32 %s226, 1
        %s2728 = scalar_lea.sflag [#allocation4], %s2727
        %s2729 = sand.u32 %s226, 1
        %s2730 = smul.addr %s2729, 64
        %s2731 = scalar_lea.vmem [#allocation3], %s2730
        // Predicated region
        $region53: #{bottleneck_forward.1} parent=51 // pred_check
          %p2732 = pneg %p236
        $region54: #{bottleneck_forward.1} parent=51 // pred_check_branch
          %2734 = sbr.rel (%p2732) target = $region56
        $region55: #{bottleneck_forward.1} parent=51 // pred_region
          %s2735 = smul.u32 8, %s27
          %2737 = vsyncadd %s2728, 0
          %s2738 = smul.addr %s2735, 2
          %s2739 = smul.addr %s26, 32
          %s2740 = sadd.s32 %s2738, %s2739
          %s2741 = smul.addr %s2740, 4
          %s2742 = scalar_lea.hbm %s8, %s2741
          %s2743 = sshll.u32 %s2731, 4
          %s2744 = int_to_ptr.vmem [resolvable:$true] %s2743
          %s2745 = sshll.u32 %s2742, 4
          %s2746 = int_to_ptr.hbm [resolvable:$true] %s2745
          %2751 = dma.vmem_to_hbm [thread:$0]  %s2744, 1024, %s2746, %s2728, 64, 64, 4
        $region56: #{bottleneck_forward.1} parent=51 // pred_fallthru
          _
      $region52: #{bottleneck_forward.1} parent=5 // pred_fallthru
        _
      %p2752 = scmp.le.s32.totalorder 2, %s17
      // Predicated region
      $region57: #{bottleneck_forward.1} parent=5 // pred_check
        %p2753 = pneg %p2752
      $region58: #{bottleneck_forward.1} parent=5 // pred_check_branch
        %2755 = sbr.rel (%p2753) target = $region60
      $region59: #{bottleneck_forward.1} parent=5 // pred_region
        %s2756 = ssub.s32 %s17, 2
        // Predicated region
        $region61: #{bottleneck_forward.1} parent=59 // pred_check
          %p2757 = pneg %p242
        $region62: #{bottleneck_forward.1} parent=59 // pred_check_branch
          %2759 = sbr.rel (%p2757) target = $region64
        $region63: #{bottleneck_forward.1} parent=59 // pred_region
          %s2760 = sand.u32 %s227, 1
          %s2761 = scalar_lea.sflag [#allocation4], %s2760
          %s2762 = sand.u32 %s227, 1
          %s2763 = smul.addr %s2762, 64
          %s2764 = scalar_lea.vmem [#allocation3], %s2763
          %2766 = dma.done %s2761, 1024
        $region64: #{bottleneck_forward.1} parent=59 // pred_fallthru
          _
      $region60: #{bottleneck_forward.1} parent=5 // pred_fallthru
        _
    $region6: #{bottleneck_forward.1} parent=1 // loop_footer
      %s21 = sadd.s32 1, %s17
    $region7: #{bottleneck_forward.1} parent=1 // loop_footer_branch
      %16 = sbr.rel target = $region3
    $region8: #{bottleneck_forward.1} parent=1 // loop_exit
      _
    %2767 = vsyncpa [#allocation4], 1
    %s2768 = scalar_lea.sflag [#allocation4], 1
    %2769 = vsyncpa %s2768, 1

</llo_original>
